<compile_context>
chip_gen: v5e
topology: v5e:2x2
jax: 0.10.0
libtpu: 0.0.40
codegen_flags: <defaults>
</compile_context>

<pallas_src>
import jax
import jax.numpy as jnp
from jax import lax
from jax.experimental import pallas as pl
from jax.experimental.pallas import tpu as pltpu


# ------------------------------ fused Pallas kernel ------------------------------ #

def _make_fused_kernel(in_ch, num_actions, oh1, ow1):
    """Builds the fused forward kernel for a given channel count / head width."""
    K1 = 9 * in_ch                          # conv1 taps (kh * kw * cin)
    # offsets into the packed SMEM parameter vector
    C1B = K1
    C2W, C2B = K1 + 1, K1 + 10
    C3W, C3B = K1 + 11, K1 + 20

    ph1, pw1 = (oh1 - 7) // 2 + 1, (ow1 - 7) // 2 + 1        # maxpool1 out (10, 10)
    oh2, ow2 = ph1 - 2, pw1 - 2                              # conv2 out    (8, 8)
    ph2, pw2 = oh2 // 2, ow2 // 2                            # maxpool2 out (4, 4)
    oh3, ow3 = ph2 - 2, pw2 - 2                              # conv3 out    (2, 2)
    assert oh3 * ow3 == 4, "architecture requires a 2x2 conv3 output (Linear(4, ...))"

    def kernel(taps_ref, cw_ref, w1_ref, w2_ref, act_ref, base_ref,
               p1r_ref, p1_ref, p2r_ref, p2_ref, feat_ref):
        # ---- conv1: K1 unrolled tap multiply-adds (VPU), stride baked into taps ----
        y = cw_ref[C1B] + cw_ref[0] * taps_ref[:, 0, :, :]
        for k in range(1, K1):
            y = y + cw_ref[k] * taps_ref[:, k, :, :]          # (B, 25, 25)

        # ---- maxpool1: 7x7 / stride 2, separable (rows then cols) ----
        for i in range(ph1):
            p1r_ref[:, i:i + 1, :] = jnp.max(
                y[:, 2 * i:2 * i + 7, :], axis=1, keepdims=True)
        yr = p1r_ref[...]                                     # (B, 10, 25)
        for j in range(pw1):
            p1_ref[:, :, j:j + 1] = jnp.max(
                yr[:, :, 2 * j:2 * j + 7], axis=2, keepdims=True)
        y = p1_ref[...]                                       # (B, 10, 10)

        # ---- conv2: 3x3 / stride 1, 9 unrolled taps ----
        acc = cw_ref[C2B] + cw_ref[C2W] * y[:, 0:oh2, 0:ow2]
        for dh in range(3):
            for dw in range(3):
                if dh == 0 and dw == 0:
                    continue
                acc = acc + cw_ref[C2W + 3 * dh + dw] * y[:, dh:dh + oh2, dw:dw + ow2]
        y = acc                                               # (B, 8, 8)

        # ---- maxpool2: 2x2 / stride 2, separable ----
        for i in range(ph2):
            p2r_ref[:, i:i + 1, :] = jnp.max(
                y[:, 2 * i:2 * i + 2, :], axis=1, keepdims=True)
        yr = p2r_ref[...]                                     # (B, 4, 8)
        for j in range(pw2):
            p2_ref[:, :, j:j + 1] = jnp.max(
                yr[:, :, 2 * j:2 * j + 2], axis=2, keepdims=True)
        y = p2_ref[...]                                       # (B, 4, 4)

        # ---- conv3: 3x3 / stride 1 -> (B, 2, 2) ----
        acc = cw_ref[C3B] + cw_ref[C3W] * y[:, 0:oh3, 0:ow3]
        for dh in range(3):
            for dw in range(3):
                if dh == 0 and dw == 0:
                    continue
                acc = acc + cw_ref[C3W + 3 * dh + dw] * y[:, dh:dh + oh3, dw:dw + ow3]

        # ---- features: row-major flatten of the 2x2 map (matches torch.reshape on NCHW) ----
        feat_ref[:, 0:ow3] = acc[:, 0, :]
        feat_ref[:, ow3:2 * ow3] = acc[:, 1, :]
        feats = feat_ref[...]                                 # (B, 4)

        # ---- heads: two 4-wide MLPs fused via packed/augmented weights (VPU GEMV) ----
        w1 = w1_ref[...]                                      # (5, 8): rows 0-3 W, row 4 bias
        w2 = w2_ref[...]                                      # (9, A+1): block-diag W + bias row
        h = jnp.sum(feats[:, :, None] * w1[None, 0:4, :], axis=1) + w1[4:5, :]
        h = jnp.maximum(h, 0.0)                               # (B, 8) = [policy_h | baseline_h]
        out = jnp.sum(h[:, :, None] * w2[None, 0:8, :], axis=1) + w2[8:9, :]   # (B, A+1)
        act_ref[...] = out[:, 0:num_actions]
        base_ref[...] = out[:, num_actions:num_actions + 1]

    shapes = dict(ph1=ph1, pw1=pw1, oh2=oh2, ow2=ow2, ph2=ph2, pw2=pw2)
    return kernel, shapes


# ----------------------------------- JAX wrapper ---------------------------------- #

def forward(x, params):
    """x: (1, B, H, W, C) -> (action (B, A), baseline (B, 1)); one fused Pallas kernel."""
    x = jnp.squeeze(x, 0).astype(jnp.float32)                 # (B, H, W, C); PyTorch's NCHW
    B, H, W, C = x.shape                                      # permute is absorbed by the gather
    A = params["policy_w2"].shape[1]

    # conv1 im2col, tap-major layout (B, 9C, OH, OW); taps ordered (kh, kw, cin) to match
    # conv1_w.reshape(-1).  This is the only XLA-side data prep.
    k1, s1 = 3, 4
    oh1 = (H - k1) // s1 + 1
    ow1 = (W - k1) // s1 + 1
    taps = []
    for dh in range(k1):
        for dw in range(k1):
            for c in range(C):
                taps.append(x[:, dh:dh + s1 * (oh1 - 1) + 1:s1,
                              dw:dw + s1 * (ow1 - 1) + 1:s1, c])
    taps = jnp.stack(taps, axis=1)                            # (B, 9C, oh1, ow1)

    # Conv weights + biases packed into one SMEM vector (scalar reads inside the kernel).
    cw = jnp.concatenate([
        params["conv1_w"].reshape(-1), params["conv1_b"],
        params["conv2_w"].reshape(-1), params["conv2_b"],
        params["conv3_w"].reshape(-1), params["conv3_b"],
    ]).astype(jnp.float32)                                    # (9C + 21,)

    # Heads packed into two augmented matrices (last row = bias).
    w1_aug = jnp.concatenate([
        jnp.concatenate([params["policy_w1"], params["baseline_w1"]], axis=1),
        jnp.concatenate([params["policy_b1"], params["baseline_b1"]])[None, :],
    ], axis=0).astype(jnp.float32)                            # (5, 8)

    w2_blk = jnp.zeros((8, A + 1), jnp.float32)
    w2_blk = w2_blk.at[0:4, 0:A].set(params["policy_w2"])
    w2_blk = w2_blk.at[4:8, A:A + 1].set(params["baseline_w2"])
    b2 = jnp.concatenate([params["policy_b2"], params["baseline_b2"]])
    w2_aug = jnp.concatenate([w2_blk, b2[None, :]], axis=0).astype(jnp.float32)  # (9, A+1)

    kernel, s = _make_fused_kernel(C, A, oh1, ow1)

    vmem = pl.BlockSpec(memory_space=pltpu.MemorySpace.VMEM)
    smem = pl.BlockSpec(memory_space=pltpu.MemorySpace.SMEM)
    action, baseline = pl.pallas_call(
        kernel,
        out_shape=(jax.ShapeDtypeStruct((B, A), jnp.float32),
                   jax.ShapeDtypeStruct((B, 1), jnp.float32)),
        in_specs=[vmem, smem, vmem, vmem],
        out_specs=(vmem, vmem),
        scratch_shapes=[
            pltpu.VMEM((B, s["ph1"], ow1), jnp.float32),        # pool1 row-reduced
            pltpu.VMEM((B, s["ph1"], s["pw1"]), jnp.float32),   # pool1 output
            pltpu.VMEM((B, s["ph2"], s["ow2"]), jnp.float32),   # pool2 row-reduced
            pltpu.VMEM((B, s["ph2"], s["pw2"]), jnp.float32),   # pool2 output
            pltpu.VMEM((B, 4), jnp.float32),                    # flattened conv3 features
        ],
    )(taps, cw, w1_aug, w2_aug)
    return action, baseline


# ---------------------------------- params & ref ---------------------------------- #

def init_params(key, num_actions, in_ch=3):
    ks = jax.random.split(key, 14)

    def u(k, shape, fan_in):
        bound = 1.0 / (fan_in ** 0.5)
        return jax.random.uniform(k, shape, jnp.float32, -bound, bound)

    p = {}
    p["conv1_w"] = u(ks[0], (3, 3, in_ch), 3 * 3 * in_ch)     # (kh, kw, cin), out_ch = 1
    p["conv1_b"] = u(ks[1], (1,), 3 * 3 * in_ch)
    p["conv2_w"] = u(ks[2], (3, 3, 1), 9)
    p["conv2_b"] = u(ks[3], (1,), 9)
    p["conv3_w"] = u(ks[4], (3, 3, 1), 9)
    p["conv3_b"] = u(ks[5], (1,), 9)
    p["policy_w1"] = u(ks[6], (4, 4), 4)                      # stored as (in, out)
    p["policy_b1"] = u(ks[7], (4,), 4)
    p["policy_w2"] = u(ks[8], (4, num_actions), 4)
    p["policy_b2"] = u(ks[9], (num_actions,), 4)
    p["baseline_w1"] = u(ks[10], (4, 4), 4)
    p["baseline_b1"] = u(ks[11], (4,), 4)
    p["baseline_w2"] = u(ks[12], (4, 1), 4)
    p["baseline_b2"] = u(ks[13], (1,), 4)
    return p


def forward_ref(x, params):
    """Pure-JAX reference (lax.conv / reduce_window) for correctness checking."""
    x = jnp.squeeze(x, 0)

    def conv(x, w, b, stride):
        y = lax.conv_general_dilated(x, w[..., None], (stride, stride), "VALID",
                                     dimension_numbers=("NHWC", "HWIO", "NHWC"))
        return y + b

    def maxpool(x, k, s):
        return lax.reduce_window(x, -jnp.inf, lax.max, (1, k, k, 1), (1, s, s, 1), "VALID")

    y = maxpool(conv(x, params["conv1_w"], params["conv1_b"], 4), 7, 2)
    y = maxpool(conv(y, params["conv2_w"], params["conv2_b"], 1), 2, 2)
    y = conv(y, params["conv3_w"], params["conv3_b"], 1)
    feats = y.reshape(y.shape[0], -1)
    h = jnp.maximum(feats @ params["policy_w1"] + params["policy_b1"], 0.0)
    action = h @ params["policy_w2"] + params["policy_b2"]
    g = jnp.maximum(feats @ params["baseline_w1"] + params["baseline_b1"], 0.0)
    baseline = g @ params["baseline_w2"] + params["baseline_b2"]
    return action, baseline


if __name__ == "__main__":
    num_actions = 6
    B, H, W, C = 2, 100, 100, 3   # H=W=100 is the size implied by Linear(4, ...) -> 2x2x1 features

    key = jax.random.PRNGKey(0)
    kx, kp = jax.random.split(key)
    x = jax.random.normal(kx, (1, B, H, W, C), dtype=jnp.float32)
    params = init_params(kp, num_actions, in_ch=C)

    fwd = jax.jit(forward)
    action, baseline = jax.block_until_ready(fwd(x, params))

    ref_action, ref_baseline = forward_ref(x, params)
    assert action.shape == (B, num_actions) and baseline.shape == (B, 1)
    assert jnp.allclose(action, ref_action, atol=1e-4, rtol=1e-4)
    assert jnp.allclose(baseline, ref_baseline, atol=1e-4, rtol=1e-4)

    print("KERNEL_OK")
</pallas_src>

<mosaic_0001>
module attributes {stable_mosaic.version = 11 : i64} {
  func.func @kernel(%arg0: memref<2x27x25x25xf32, #tpu.memory_space<vmem>>, %arg1: memref<48xf32, #tpu.memory_space<smem>>, %arg2: memref<5x8xf32, #tpu.memory_space<vmem>>, %arg3: memref<9x7xf32, #tpu.memory_space<vmem>>, %arg4: memref<2x6xf32, #tpu.memory_space<vmem>>, %arg5: memref<2x1xf32, #tpu.memory_space<vmem>>, %arg6: memref<2x10x25xf32, #tpu.memory_space<vmem>>, %arg7: memref<2x10x10xf32, #tpu.memory_space<vmem>>, %arg8: memref<2x4x8xf32, #tpu.memory_space<vmem>>, %arg9: memref<2x4x4xf32, #tpu.memory_space<vmem>>, %arg10: memref<2x4xf32, #tpu.memory_space<vmem>>) attributes {dimension_semantics = [], scalar_prefetch = 0 : i64, scratch_operands = 5 : i64, tpu.core_type = #tpu.core_type<tc>} {
    %c27 = arith.constant 27 : index
    %0 = memref.load %arg1[%c27] : memref<48xf32, #tpu.memory_space<smem>>
    %c0 = arith.constant 0 : index
    %1 = memref.load %arg1[%c0] : memref<48xf32, #tpu.memory_space<smem>>
    %c0_0 = arith.constant 0 : index
    %c0_1 = arith.constant 0 : index
    %c0_2 = arith.constant 0 : index
    %c0_3 = arith.constant 0 : index
    %2 = vector.load %arg0[%c0_0, %c0_1, %c0_2, %c0_3] : memref<2x27x25x25xf32, #tpu.memory_space<vmem>>, vector<2x1x25x25xf32>
    %3 = vector.shape_cast %2 : vector<2x1x25x25xf32> to vector<2x25x25xf32>
    %4 = vector.broadcast %1 : f32 to vector<2x25x25xf32>
    %5 = arith.mulf %4, %3 : vector<2x25x25xf32>
    %6 = vector.broadcast %0 : f32 to vector<2x25x25xf32>
    %7 = arith.addf %6, %5 : vector<2x25x25xf32>
    %c1 = arith.constant 1 : index
    %8 = memref.load %arg1[%c1] : memref<48xf32, #tpu.memory_space<smem>>
    %c0_4 = arith.constant 0 : index
    %c1_5 = arith.constant 1 : index
    %c0_6 = arith.constant 0 : index
    %c0_7 = arith.constant 0 : index
    %9 = vector.load %arg0[%c0_4, %c1_5, %c0_6, %c0_7] : memref<2x27x25x25xf32, #tpu.memory_space<vmem>>, vector<2x1x25x25xf32>
    %10 = vector.shape_cast %9 : vector<2x1x25x25xf32> to vector<2x25x25xf32>
    %11 = vector.broadcast %8 : f32 to vector<2x25x25xf32>
    %12 = arith.mulf %11, %10 : vector<2x25x25xf32>
    %13 = arith.addf %7, %12 : vector<2x25x25xf32>
    %c2 = arith.constant 2 : index
    %14 = memref.load %arg1[%c2] : memref<48xf32, #tpu.memory_space<smem>>
    %c0_8 = arith.constant 0 : index
    %c2_9 = arith.constant 2 : index
    %c0_10 = arith.constant 0 : index
    %c0_11 = arith.constant 0 : index
    %15 = vector.load %arg0[%c0_8, %c2_9, %c0_10, %c0_11] : memref<2x27x25x25xf32, #tpu.memory_space<vmem>>, vector<2x1x25x25xf32>
    %16 = vector.shape_cast %15 : vector<2x1x25x25xf32> to vector<2x25x25xf32>
    %17 = vector.broadcast %14 : f32 to vector<2x25x25xf32>
    %18 = arith.mulf %17, %16 : vector<2x25x25xf32>
    %19 = arith.addf %13, %18 : vector<2x25x25xf32>
    %c3 = arith.constant 3 : index
    %20 = memref.load %arg1[%c3] : memref<48xf32, #tpu.memory_space<smem>>
    %c0_12 = arith.constant 0 : index
    %c3_13 = arith.constant 3 : index
    %c0_14 = arith.constant 0 : index
    %c0_15 = arith.constant 0 : index
    %21 = vector.load %arg0[%c0_12, %c3_13, %c0_14, %c0_15] : memref<2x27x25x25xf32, #tpu.memory_space<vmem>>, vector<2x1x25x25xf32>
    %22 = vector.shape_cast %21 : vector<2x1x25x25xf32> to vector<2x25x25xf32>
    %23 = vector.broadcast %20 : f32 to vector<2x25x25xf32>
    %24 = arith.mulf %23, %22 : vector<2x25x25xf32>
    %25 = arith.addf %19, %24 : vector<2x25x25xf32>
    %c4 = arith.constant 4 : index
    %26 = memref.load %arg1[%c4] : memref<48xf32, #tpu.memory_space<smem>>
    %c0_16 = arith.constant 0 : index
    %c4_17 = arith.constant 4 : index
    %c0_18 = arith.constant 0 : index
    %c0_19 = arith.constant 0 : index
    %27 = vector.load %arg0[%c0_16, %c4_17, %c0_18, %c0_19] : memref<2x27x25x25xf32, #tpu.memory_space<vmem>>, vector<2x1x25x25xf32>
    %28 = vector.shape_cast %27 : vector<2x1x25x25xf32> to vector<2x25x25xf32>
    %29 = vector.broadcast %26 : f32 to vector<2x25x25xf32>
    %30 = arith.mulf %29, %28 : vector<2x25x25xf32>
    %31 = arith.addf %25, %30 : vector<2x25x25xf32>
    %c5 = arith.constant 5 : index
    %32 = memref.load %arg1[%c5] : memref<48xf32, #tpu.memory_space<smem>>
    %c0_20 = arith.constant 0 : index
    %c5_21 = arith.constant 5 : index
    %c0_22 = arith.constant 0 : index
    %c0_23 = arith.constant 0 : index
    %33 = vector.load %arg0[%c0_20, %c5_21, %c0_22, %c0_23] : memref<2x27x25x25xf32, #tpu.memory_space<vmem>>, vector<2x1x25x25xf32>
    %34 = vector.shape_cast %33 : vector<2x1x25x25xf32> to vector<2x25x25xf32>
    %35 = vector.broadcast %32 : f32 to vector<2x25x25xf32>
    %36 = arith.mulf %35, %34 : vector<2x25x25xf32>
    %37 = arith.addf %31, %36 : vector<2x25x25xf32>
    %c6 = arith.constant 6 : index
    %38 = memref.load %arg1[%c6] : memref<48xf32, #tpu.memory_space<smem>>
    %c0_24 = arith.constant 0 : index
    %c6_25 = arith.constant 6 : index
    %c0_26 = arith.constant 0 : index
    %c0_27 = arith.constant 0 : index
    %39 = vector.load %arg0[%c0_24, %c6_25, %c0_26, %c0_27] : memref<2x27x25x25xf32, #tpu.memory_space<vmem>>, vector<2x1x25x25xf32>
    %40 = vector.shape_cast %39 : vector<2x1x25x25xf32> to vector<2x25x25xf32>
    %41 = vector.broadcast %38 : f32 to vector<2x25x25xf32>
    %42 = arith.mulf %41, %40 : vector<2x25x25xf32>
    %43 = arith.addf %37, %42 : vector<2x25x25xf32>
    %c7 = arith.constant 7 : index
    %44 = memref.load %arg1[%c7] : memref<48xf32, #tpu.memory_space<smem>>
    %c0_28 = arith.constant 0 : index
    %c7_29 = arith.constant 7 : index
    %c0_30 = arith.constant 0 : index
    %c0_31 = arith.constant 0 : index
    %45 = vector.load %arg0[%c0_28, %c7_29, %c0_30, %c0_31] : memref<2x27x25x25xf32, #tpu.memory_space<vmem>>, vector<2x1x25x25xf32>
    %46 = vector.shape_cast %45 : vector<2x1x25x25xf32> to vector<2x25x25xf32>
    %47 = vector.broadcast %44 : f32 to vector<2x25x25xf32>
    %48 = arith.mulf %47, %46 : vector<2x25x25xf32>
    %49 = arith.addf %43, %48 : vector<2x25x25xf32>
    %c8 = arith.constant 8 : index
    %50 = memref.load %arg1[%c8] : memref<48xf32, #tpu.memory_space<smem>>
    %c0_32 = arith.constant 0 : index
    %c8_33 = arith.constant 8 : index
    %c0_34 = arith.constant 0 : index
    %c0_35 = arith.constant 0 : index
    %51 = vector.load %arg0[%c0_32, %c8_33, %c0_34, %c0_35] : memref<2x27x25x25xf32, #tpu.memory_space<vmem>>, vector<2x1x25x25xf32>
    %52 = vector.shape_cast %51 : vector<2x1x25x25xf32> to vector<2x25x25xf32>
    %53 = vector.broadcast %50 : f32 to vector<2x25x25xf32>
    %54 = arith.mulf %53, %52 : vector<2x25x25xf32>
    %55 = arith.addf %49, %54 : vector<2x25x25xf32>
    %c9 = arith.constant 9 : index
    %56 = memref.load %arg1[%c9] : memref<48xf32, #tpu.memory_space<smem>>
    %c0_36 = arith.constant 0 : index
    %c9_37 = arith.constant 9 : index
    %c0_38 = arith.constant 0 : index
    %c0_39 = arith.constant 0 : index
    %57 = vector.load %arg0[%c0_36, %c9_37, %c0_38, %c0_39] : memref<2x27x25x25xf32, #tpu.memory_space<vmem>>, vector<2x1x25x25xf32>
    %58 = vector.shape_cast %57 : vector<2x1x25x25xf32> to vector<2x25x25xf32>
    %59 = vector.broadcast %56 : f32 to vector<2x25x25xf32>
    %60 = arith.mulf %59, %58 : vector<2x25x25xf32>
    %61 = arith.addf %55, %60 : vector<2x25x25xf32>
    %c10 = arith.constant 10 : index
    %62 = memref.load %arg1[%c10] : memref<48xf32, #tpu.memory_space<smem>>
    %c0_40 = arith.constant 0 : index
    %c10_41 = arith.constant 10 : index
    %c0_42 = arith.constant 0 : index
    %c0_43 = arith.constant 0 : index
    %63 = vector.load %arg0[%c0_40, %c10_41, %c0_42, %c0_43] : memref<2x27x25x25xf32, #tpu.memory_space<vmem>>, vector<2x1x25x25xf32>
    %64 = vector.shape_cast %63 : vector<2x1x25x25xf32> to vector<2x25x25xf32>
    %65 = vector.broadcast %62 : f32 to vector<2x25x25xf32>
    %66 = arith.mulf %65, %64 : vector<2x25x25xf32>
    %67 = arith.addf %61, %66 : vector<2x25x25xf32>
    %c11 = arith.constant 11 : index
    %68 = memref.load %arg1[%c11] : memref<48xf32, #tpu.memory_space<smem>>
    %c0_44 = arith.constant 0 : index
    %c11_45 = arith.constant 11 : index
    %c0_46 = arith.constant 0 : index
    %c0_47 = arith.constant 0 : index
    %69 = vector.load %arg0[%c0_44, %c11_45, %c0_46, %c0_47] : memref<2x27x25x25xf32, #tpu.memory_space<vmem>>, vector<2x1x25x25xf32>
    %70 = vector.shape_cast %69 : vector<2x1x25x25xf32> to vector<2x25x25xf32>
    %71 = vector.broadcast %68 : f32 to vector<2x25x25xf32>
    %72 = arith.mulf %71, %70 : vector<2x25x25xf32>
    %73 = arith.addf %67, %72 : vector<2x25x25xf32>
    %c12 = arith.constant 12 : index
    %74 = memref.load %arg1[%c12] : memref<48xf32, #tpu.memory_space<smem>>
    %c0_48 = arith.constant 0 : index
    %c12_49 = arith.constant 12 : index
    %c0_50 = arith.constant 0 : index
    %c0_51 = arith.constant 0 : index
    %75 = vector.load %arg0[%c0_48, %c12_49, %c0_50, %c0_51] : memref<2x27x25x25xf32, #tpu.memory_space<vmem>>, vector<2x1x25x25xf32>
    %76 = vector.shape_cast %75 : vector<2x1x25x25xf32> to vector<2x25x25xf32>
    %77 = vector.broadcast %74 : f32 to vector<2x25x25xf32>
    %78 = arith.mulf %77, %76 : vector<2x25x25xf32>
    %79 = arith.addf %73, %78 : vector<2x25x25xf32>
    %c13 = arith.constant 13 : index
    %80 = memref.load %arg1[%c13] : memref<48xf32, #tpu.memory_space<smem>>
    %c0_52 = arith.constant 0 : index
    %c13_53 = arith.constant 13 : index
    %c0_54 = arith.constant 0 : index
    %c0_55 = arith.constant 0 : index
    %81 = vector.load %arg0[%c0_52, %c13_53, %c0_54, %c0_55] : memref<2x27x25x25xf32, #tpu.memory_space<vmem>>, vector<2x1x25x25xf32>
    %82 = vector.shape_cast %81 : vector<2x1x25x25xf32> to vector<2x25x25xf32>
    %83 = vector.broadcast %80 : f32 to vector<2x25x25xf32>
    %84 = arith.mulf %83, %82 : vector<2x25x25xf32>
    %85 = arith.addf %79, %84 : vector<2x25x25xf32>
    %c14 = arith.constant 14 : index
    %86 = memref.load %arg1[%c14] : memref<48xf32, #tpu.memory_space<smem>>
    %c0_56 = arith.constant 0 : index
    %c14_57 = arith.constant 14 : index
    %c0_58 = arith.constant 0 : index
    %c0_59 = arith.constant 0 : index
    %87 = vector.load %arg0[%c0_56, %c14_57, %c0_58, %c0_59] : memref<2x27x25x25xf32, #tpu.memory_space<vmem>>, vector<2x1x25x25xf32>
    %88 = vector.shape_cast %87 : vector<2x1x25x25xf32> to vector<2x25x25xf32>
    %89 = vector.broadcast %86 : f32 to vector<2x25x25xf32>
    %90 = arith.mulf %89, %88 : vector<2x25x25xf32>
    %91 = arith.addf %85, %90 : vector<2x25x25xf32>
    %c15 = arith.constant 15 : index
    %92 = memref.load %arg1[%c15] : memref<48xf32, #tpu.memory_space<smem>>
    %c0_60 = arith.constant 0 : index
    %c15_61 = arith.constant 15 : index
    %c0_62 = arith.constant 0 : index
    %c0_63 = arith.constant 0 : index
    %93 = vector.load %arg0[%c0_60, %c15_61, %c0_62, %c0_63] : memref<2x27x25x25xf32, #tpu.memory_space<vmem>>, vector<2x1x25x25xf32>
    %94 = vector.shape_cast %93 : vector<2x1x25x25xf32> to vector<2x25x25xf32>
    %95 = vector.broadcast %92 : f32 to vector<2x25x25xf32>
    %96 = arith.mulf %95, %94 : vector<2x25x25xf32>
    %97 = arith.addf %91, %96 : vector<2x25x25xf32>
    %c16 = arith.constant 16 : index
    %98 = memref.load %arg1[%c16] : memref<48xf32, #tpu.memory_space<smem>>
    %c0_64 = arith.constant 0 : index
    %c16_65 = arith.constant 16 : index
    %c0_66 = arith.constant 0 : index
    %c0_67 = arith.constant 0 : index
    %99 = vector.load %arg0[%c0_64, %c16_65, %c0_66, %c0_67] : memref<2x27x25x25xf32, #tpu.memory_space<vmem>>, vector<2x1x25x25xf32>
    %100 = vector.shape_cast %99 : vector<2x1x25x25xf32> to vector<2x25x25xf32>
    %101 = vector.broadcast %98 : f32 to vector<2x25x25xf32>
    %102 = arith.mulf %101, %100 : vector<2x25x25xf32>
    %103 = arith.addf %97, %102 : vector<2x25x25xf32>
    %c17 = arith.constant 17 : index
    %104 = memref.load %arg1[%c17] : memref<48xf32, #tpu.memory_space<smem>>
    %c0_68 = arith.constant 0 : index
    %c17_69 = arith.constant 17 : index
    %c0_70 = arith.constant 0 : index
    %c0_71 = arith.constant 0 : index
    %105 = vector.load %arg0[%c0_68, %c17_69, %c0_70, %c0_71] : memref<2x27x25x25xf32, #tpu.memory_space<vmem>>, vector<2x1x25x25xf32>
    %106 = vector.shape_cast %105 : vector<2x1x25x25xf32> to vector<2x25x25xf32>
    %107 = vector.broadcast %104 : f32 to vector<2x25x25xf32>
    %108 = arith.mulf %107, %106 : vector<2x25x25xf32>
    %109 = arith.addf %103, %108 : vector<2x25x25xf32>
    %c18 = arith.constant 18 : index
    %110 = memref.load %arg1[%c18] : memref<48xf32, #tpu.memory_space<smem>>
    %c0_72 = arith.constant 0 : index
    %c18_73 = arith.constant 18 : index
    %c0_74 = arith.constant 0 : index
    %c0_75 = arith.constant 0 : index
    %111 = vector.load %arg0[%c0_72, %c18_73, %c0_74, %c0_75] : memref<2x27x25x25xf32, #tpu.memory_space<vmem>>, vector<2x1x25x25xf32>
    %112 = vector.shape_cast %111 : vector<2x1x25x25xf32> to vector<2x25x25xf32>
    %113 = vector.broadcast %110 : f32 to vector<2x25x25xf32>
    %114 = arith.mulf %113, %112 : vector<2x25x25xf32>
    %115 = arith.addf %109, %114 : vector<2x25x25xf32>
    %c19 = arith.constant 19 : index
    %116 = memref.load %arg1[%c19] : memref<48xf32, #tpu.memory_space<smem>>
    %c0_76 = arith.constant 0 : index
    %c19_77 = arith.constant 19 : index
    %c0_78 = arith.constant 0 : index
    %c0_79 = arith.constant 0 : index
    %117 = vector.load %arg0[%c0_76, %c19_77, %c0_78, %c0_79] : memref<2x27x25x25xf32, #tpu.memory_space<vmem>>, vector<2x1x25x25xf32>
    %118 = vector.shape_cast %117 : vector<2x1x25x25xf32> to vector<2x25x25xf32>
    %119 = vector.broadcast %116 : f32 to vector<2x25x25xf32>
    %120 = arith.mulf %119, %118 : vector<2x25x25xf32>
    %121 = arith.addf %115, %120 : vector<2x25x25xf32>
    %c20 = arith.constant 20 : index
    %122 = memref.load %arg1[%c20] : memref<48xf32, #tpu.memory_space<smem>>
    %c0_80 = arith.constant 0 : index
    %c20_81 = arith.constant 20 : index
    %c0_82 = arith.constant 0 : index
    %c0_83 = arith.constant 0 : index
    %123 = vector.load %arg0[%c0_80, %c20_81, %c0_82, %c0_83] : memref<2x27x25x25xf32, #tpu.memory_space<vmem>>, vector<2x1x25x25xf32>
    %124 = vector.shape_cast %123 : vector<2x1x25x25xf32> to vector<2x25x25xf32>
    %125 = vector.broadcast %122 : f32 to vector<2x25x25xf32>
    %126 = arith.mulf %125, %124 : vector<2x25x25xf32>
    %127 = arith.addf %121, %126 : vector<2x25x25xf32>
    %c21 = arith.constant 21 : index
    %128 = memref.load %arg1[%c21] : memref<48xf32, #tpu.memory_space<smem>>
    %c0_84 = arith.constant 0 : index
    %c21_85 = arith.constant 21 : index
    %c0_86 = arith.constant 0 : index
    %c0_87 = arith.constant 0 : index
    %129 = vector.load %arg0[%c0_84, %c21_85, %c0_86, %c0_87] : memref<2x27x25x25xf32, #tpu.memory_space<vmem>>, vector<2x1x25x25xf32>
    %130 = vector.shape_cast %129 : vector<2x1x25x25xf32> to vector<2x25x25xf32>
    %131 = vector.broadcast %128 : f32 to vector<2x25x25xf32>
    %132 = arith.mulf %131, %130 : vector<2x25x25xf32>
    %133 = arith.addf %127, %132 : vector<2x25x25xf32>
    %c22 = arith.constant 22 : index
    %134 = memref.load %arg1[%c22] : memref<48xf32, #tpu.memory_space<smem>>
    %c0_88 = arith.constant 0 : index
    %c22_89 = arith.constant 22 : index
    %c0_90 = arith.constant 0 : index
    %c0_91 = arith.constant 0 : index
    %135 = vector.load %arg0[%c0_88, %c22_89, %c0_90, %c0_91] : memref<2x27x25x25xf32, #tpu.memory_space<vmem>>, vector<2x1x25x25xf32>
    %136 = vector.shape_cast %135 : vector<2x1x25x25xf32> to vector<2x25x25xf32>
    %137 = vector.broadcast %134 : f32 to vector<2x25x25xf32>
    %138 = arith.mulf %137, %136 : vector<2x25x25xf32>
    %139 = arith.addf %133, %138 : vector<2x25x25xf32>
    %c23 = arith.constant 23 : index
    %140 = memref.load %arg1[%c23] : memref<48xf32, #tpu.memory_space<smem>>
    %c0_92 = arith.constant 0 : index
    %c23_93 = arith.constant 23 : index
    %c0_94 = arith.constant 0 : index
    %c0_95 = arith.constant 0 : index
    %141 = vector.load %arg0[%c0_92, %c23_93, %c0_94, %c0_95] : memref<2x27x25x25xf32, #tpu.memory_space<vmem>>, vector<2x1x25x25xf32>
    %142 = vector.shape_cast %141 : vector<2x1x25x25xf32> to vector<2x25x25xf32>
    %143 = vector.broadcast %140 : f32 to vector<2x25x25xf32>
    %144 = arith.mulf %143, %142 : vector<2x25x25xf32>
    %145 = arith.addf %139, %144 : vector<2x25x25xf32>
    %c24 = arith.constant 24 : index
    %146 = memref.load %arg1[%c24] : memref<48xf32, #tpu.memory_space<smem>>
    %c0_96 = arith.constant 0 : index
    %c24_97 = arith.constant 24 : index
    %c0_98 = arith.constant 0 : index
    %c0_99 = arith.constant 0 : index
    %147 = vector.load %arg0[%c0_96, %c24_97, %c0_98, %c0_99] : memref<2x27x25x25xf32, #tpu.memory_space<vmem>>, vector<2x1x25x25xf32>
    %148 = vector.shape_cast %147 : vector<2x1x25x25xf32> to vector<2x25x25xf32>
    %149 = vector.broadcast %146 : f32 to vector<2x25x25xf32>
    %150 = arith.mulf %149, %148 : vector<2x25x25xf32>
    %151 = arith.addf %145, %150 : vector<2x25x25xf32>
    %c25 = arith.constant 25 : index
    %152 = memref.load %arg1[%c25] : memref<48xf32, #tpu.memory_space<smem>>
    %c0_100 = arith.constant 0 : index
    %c25_101 = arith.constant 25 : index
    %c0_102 = arith.constant 0 : index
    %c0_103 = arith.constant 0 : index
    %153 = vector.load %arg0[%c0_100, %c25_101, %c0_102, %c0_103] : memref<2x27x25x25xf32, #tpu.memory_space<vmem>>, vector<2x1x25x25xf32>
    %154 = vector.shape_cast %153 : vector<2x1x25x25xf32> to vector<2x25x25xf32>
    %155 = vector.broadcast %152 : f32 to vector<2x25x25xf32>
    %156 = arith.mulf %155, %154 : vector<2x25x25xf32>
    %157 = arith.addf %151, %156 : vector<2x25x25xf32>
    %c26 = arith.constant 26 : index
    %158 = memref.load %arg1[%c26] : memref<48xf32, #tpu.memory_space<smem>>
    %c0_104 = arith.constant 0 : index
    %c26_105 = arith.constant 26 : index
    %c0_106 = arith.constant 0 : index
    %c0_107 = arith.constant 0 : index
    %159 = vector.load %arg0[%c0_104, %c26_105, %c0_106, %c0_107] : memref<2x27x25x25xf32, #tpu.memory_space<vmem>>, vector<2x1x25x25xf32>
    %160 = vector.shape_cast %159 : vector<2x1x25x25xf32> to vector<2x25x25xf32>
    %161 = vector.broadcast %158 : f32 to vector<2x25x25xf32>
    %162 = arith.mulf %161, %160 : vector<2x25x25xf32>
    %163 = arith.addf %157, %162 : vector<2x25x25xf32>
    %164 = vector.extract_strided_slice %163 {offsets = [0, 0, 0], sizes = [2, 7, 25], strides = [1, 1, 1]} : vector<2x25x25xf32> to vector<2x7x25xf32>
    %cst = arith.constant dense<0xFF800000> : vector<2x25xf32>
    %165 = vector.multi_reduction <maximumf>, %164, %cst [1] : vector<2x7x25xf32> to vector<2x25xf32>
    %166 = vector.shape_cast %165 : vector<2x25xf32> to vector<2x1x25xf32>
    %c0_108 = arith.constant 0 : index
    %c0_109 = arith.constant 0 : index
    %c0_110 = arith.constant 0 : index
    %167 = vector.load %arg6[%c0_108, %c0_109, %c0_110] : memref<2x10x25xf32, #tpu.memory_space<vmem>>, vector<2x1x25xf32>
    tpu.vector_store %arg6[%c0_108, %c0_109, %c0_110], %166 {strides = array<i32>} : memref<2x10x25xf32, #tpu.memory_space<vmem>>, vector<2x1x25xf32>,
    %168 = vector.extract_strided_slice %163 {offsets = [0, 2, 0], sizes = [2, 7, 25], strides = [1, 1, 1]} : vector<2x25x25xf32> to vector<2x7x25xf32>
    %cst_111 = arith.constant dense<0xFF800000> : vector<2x25xf32>
    %169 = vector.multi_reduction <maximumf>, %168, %cst_111 [1] : vector<2x7x25xf32> to vector<2x25xf32>
    %170 = vector.shape_cast %169 : vector<2x25xf32> to vector<2x1x25xf32>
    %c0_112 = arith.constant 0 : index
    %c1_113 = arith.constant 1 : index
    %c0_114 = arith.constant 0 : index
    %171 = vector.load %arg6[%c0_112, %c1_113, %c0_114] : memref<2x10x25xf32, #tpu.memory_space<vmem>>, vector<2x1x25xf32>
    tpu.vector_store %arg6[%c0_112, %c1_113, %c0_114], %170 {strides = array<i32>} : memref<2x10x25xf32, #tpu.memory_space<vmem>>, vector<2x1x25xf32>,
    %172 = vector.extract_strided_slice %163 {offsets = [0, 4, 0], sizes = [2, 7, 25], strides = [1, 1, 1]} : vector<2x25x25xf32> to vector<2x7x25xf32>
    %cst_115 = arith.constant dense<0xFF800000> : vector<2x25xf32>
    %173 = vector.multi_reduction <maximumf>, %172, %cst_115 [1] : vector<2x7x25xf32> to vector<2x25xf32>
    %174 = vector.shape_cast %173 : vector<2x25xf32> to vector<2x1x25xf32>
    %c0_116 = arith.constant 0 : index
    %c2_117 = arith.constant 2 : index
    %c0_118 = arith.constant 0 : index
    %175 = vector.load %arg6[%c0_116, %c2_117, %c0_118] : memref<2x10x25xf32, #tpu.memory_space<vmem>>, vector<2x1x25xf32>
    tpu.vector_store %arg6[%c0_116, %c2_117, %c0_118], %174 {strides = array<i32>} : memref<2x10x25xf32, #tpu.memory_space<vmem>>, vector<2x1x25xf32>,
    %176 = vector.extract_strided_slice %163 {offsets = [0, 6, 0], sizes = [2, 7, 25], strides = [1, 1, 1]} : vector<2x25x25xf32> to vector<2x7x25xf32>
    %cst_119 = arith.constant dense<0xFF800000> : vector<2x25xf32>
    %177 = vector.multi_reduction <maximumf>, %176, %cst_119 [1] : vector<2x7x25xf32> to vector<2x25xf32>
    %178 = vector.shape_cast %177 : vector<2x25xf32> to vector<2x1x25xf32>
    %c0_120 = arith.constant 0 : index
    %c3_121 = arith.constant 3 : index
    %c0_122 = arith.constant 0 : index
    %179 = vector.load %arg6[%c0_120, %c3_121, %c0_122] : memref<2x10x25xf32, #tpu.memory_space<vmem>>, vector<2x1x25xf32>
    tpu.vector_store %arg6[%c0_120, %c3_121, %c0_122], %178 {strides = array<i32>} : memref<2x10x25xf32, #tpu.memory_space<vmem>>, vector<2x1x25xf32>,
    %180 = vector.extract_strided_slice %163 {offsets = [0, 8, 0], sizes = [2, 7, 25], strides = [1, 1, 1]} : vector<2x25x25xf32> to vector<2x7x25xf32>
    %cst_123 = arith.constant dense<0xFF800000> : vector<2x25xf32>
    %181 = vector.multi_reduction <maximumf>, %180, %cst_123 [1] : vector<2x7x25xf32> to vector<2x25xf32>
    %182 = vector.shape_cast %181 : vector<2x25xf32> to vector<2x1x25xf32>
    %c0_124 = arith.constant 0 : index
    %c4_125 = arith.constant 4 : index
    %c0_126 = arith.constant 0 : index
    %183 = vector.load %arg6[%c0_124, %c4_125, %c0_126] : memref<2x10x25xf32, #tpu.memory_space<vmem>>, vector<2x1x25xf32>
    tpu.vector_store %arg6[%c0_124, %c4_125, %c0_126], %182 {strides = array<i32>} : memref<2x10x25xf32, #tpu.memory_space<vmem>>, vector<2x1x25xf32>,
    %184 = vector.extract_strided_slice %163 {offsets = [0, 10, 0], sizes = [2, 7, 25], strides = [1, 1, 1]} : vector<2x25x25xf32> to vector<2x7x25xf32>
    %cst_127 = arith.constant dense<0xFF800000> : vector<2x25xf32>
    %185 = vector.multi_reduction <maximumf>, %184, %cst_127 [1] : vector<2x7x25xf32> to vector<2x25xf32>
    %186 = vector.shape_cast %185 : vector<2x25xf32> to vector<2x1x25xf32>
    %c0_128 = arith.constant 0 : index
    %c5_129 = arith.constant 5 : index
    %c0_130 = arith.constant 0 : index
    %187 = vector.load %arg6[%c0_128, %c5_129, %c0_130] : memref<2x10x25xf32, #tpu.memory_space<vmem>>, vector<2x1x25xf32>
    tpu.vector_store %arg6[%c0_128, %c5_129, %c0_130], %186 {strides = array<i32>} : memref<2x10x25xf32, #tpu.memory_space<vmem>>, vector<2x1x25xf32>,
    %188 = vector.extract_strided_slice %163 {offsets = [0, 12, 0], sizes = [2, 7, 25], strides = [1, 1, 1]} : vector<2x25x25xf32> to vector<2x7x25xf32>
    %cst_131 = arith.constant dense<0xFF800000> : vector<2x25xf32>
    %189 = vector.multi_reduction <maximumf>, %188, %cst_131 [1] : vector<2x7x25xf32> to vector<2x25xf32>
    %190 = vector.shape_cast %189 : vector<2x25xf32> to vector<2x1x25xf32>
    %c0_132 = arith.constant 0 : index
    %c6_133 = arith.constant 6 : index
    %c0_134 = arith.constant 0 : index
    %191 = vector.load %arg6[%c0_132, %c6_133, %c0_134] : memref<2x10x25xf32, #tpu.memory_space<vmem>>, vector<2x1x25xf32>
    tpu.vector_store %arg6[%c0_132, %c6_133, %c0_134], %190 {strides = array<i32>} : memref<2x10x25xf32, #tpu.memory_space<vmem>>, vector<2x1x25xf32>,
    %192 = vector.extract_strided_slice %163 {offsets = [0, 14, 0], sizes = [2, 7, 25], strides = [1, 1, 1]} : vector<2x25x25xf32> to vector<2x7x25xf32>
    %cst_135 = arith.constant dense<0xFF800000> : vector<2x25xf32>
    %193 = vector.multi_reduction <maximumf>, %192, %cst_135 [1] : vector<2x7x25xf32> to vector<2x25xf32>
    %194 = vector.shape_cast %193 : vector<2x25xf32> to vector<2x1x25xf32>
    %c0_136 = arith.constant 0 : index
    %c7_137 = arith.constant 7 : index
    %c0_138 = arith.constant 0 : index
    %195 = vector.load %arg6[%c0_136, %c7_137, %c0_138] : memref<2x10x25xf32, #tpu.memory_space<vmem>>, vector<2x1x25xf32>
    tpu.vector_store %arg6[%c0_136, %c7_137, %c0_138], %194 {strides = array<i32>} : memref<2x10x25xf32, #tpu.memory_space<vmem>>, vector<2x1x25xf32>,
    %196 = vector.extract_strided_slice %163 {offsets = [0, 16, 0], sizes = [2, 7, 25], strides = [1, 1, 1]} : vector<2x25x25xf32> to vector<2x7x25xf32>
    %cst_139 = arith.constant dense<0xFF800000> : vector<2x25xf32>
    %197 = vector.multi_reduction <maximumf>, %196, %cst_139 [1] : vector<2x7x25xf32> to vector<2x25xf32>
    %198 = vector.shape_cast %197 : vector<2x25xf32> to vector<2x1x25xf32>
    %c0_140 = arith.constant 0 : index
    %c8_141 = arith.constant 8 : index
    %c0_142 = arith.constant 0 : index
    %199 = vector.load %arg6[%c0_140, %c8_141, %c0_142] : memref<2x10x25xf32, #tpu.memory_space<vmem>>, vector<2x1x25xf32>
    tpu.vector_store %arg6[%c0_140, %c8_141, %c0_142], %198 {strides = array<i32>} : memref<2x10x25xf32, #tpu.memory_space<vmem>>, vector<2x1x25xf32>,
    %200 = vector.extract_strided_slice %163 {offsets = [0, 18, 0], sizes = [2, 7, 25], strides = [1, 1, 1]} : vector<2x25x25xf32> to vector<2x7x25xf32>
    %cst_143 = arith.constant dense<0xFF800000> : vector<2x25xf32>
    %201 = vector.multi_reduction <maximumf>, %200, %cst_143 [1] : vector<2x7x25xf32> to vector<2x25xf32>
    %202 = vector.shape_cast %201 : vector<2x25xf32> to vector<2x1x25xf32>
    %c0_144 = arith.constant 0 : index
    %c9_145 = arith.constant 9 : index
    %c0_146 = arith.constant 0 : index
    %203 = vector.load %arg6[%c0_144, %c9_145, %c0_146] : memref<2x10x25xf32, #tpu.memory_space<vmem>>, vector<2x1x25xf32>
    tpu.vector_store %arg6[%c0_144, %c9_145, %c0_146], %202 {strides = array<i32>} : memref<2x10x25xf32, #tpu.memory_space<vmem>>, vector<2x1x25xf32>,
    %c0_147 = arith.constant 0 : index
    %c0_148 = arith.constant 0 : index
    %c0_149 = arith.constant 0 : index
    %204 = vector.load %arg6[%c0_147, %c0_148, %c0_149] : memref<2x10x25xf32, #tpu.memory_space<vmem>>, vector<2x10x25xf32>
    %205 = vector.extract_strided_slice %204 {offsets = [0, 0, 0], sizes = [2, 10, 7], strides = [1, 1, 1]} : vector<2x10x25xf32> to vector<2x10x7xf32>
    %cst_150 = arith.constant dense<0xFF800000> : vector<2x10xf32>
    %206 = vector.multi_reduction <maximumf>, %205, %cst_150 [2] : vector<2x10x7xf32> to vector<2x10xf32>
    %207 = vector.shape_cast %206 : vector<2x10xf32> to vector<2x10x1xf32>
    %c0_151 = arith.constant 0 : index
    %c0_152 = arith.constant 0 : index
    %c0_153 = arith.constant 0 : index
    %208 = vector.load %arg7[%c0_151, %c0_152, %c0_153] : memref<2x10x10xf32, #tpu.memory_space<vmem>>, vector<2x10x1xf32>
    tpu.vector_store %arg7[%c0_151, %c0_152, %c0_153], %207 {strides = array<i32>} : memref<2x10x10xf32, #tpu.memory_space<vmem>>, vector<2x10x1xf32>,
    %209 = vector.extract_strided_slice %204 {offsets = [0, 0, 2], sizes = [2, 10, 7], strides = [1, 1, 1]} : vector<2x10x25xf32> to vector<2x10x7xf32>
    %cst_154 = arith.constant dense<0xFF800000> : vector<2x10xf32>
    %210 = vector.multi_reduction <maximumf>, %209, %cst_154 [2] : vector<2x10x7xf32> to vector<2x10xf32>
    %211 = vector.shape_cast %210 : vector<2x10xf32> to vector<2x10x1xf32>
    %c0_155 = arith.constant 0 : index
    %c0_156 = arith.constant 0 : index
    %c1_157 = arith.constant 1 : index
    %212 = vector.load %arg7[%c0_155, %c0_156, %c1_157] : memref<2x10x10xf32, #tpu.memory_space<vmem>>, vector<2x10x1xf32>
    tpu.vector_store %arg7[%c0_155, %c0_156, %c1_157], %211 {strides = array<i32>} : memref<2x10x10xf32, #tpu.memory_space<vmem>>, vector<2x10x1xf32>,
    %213 = vector.extract_strided_slice %204 {offsets = [0, 0, 4], sizes = [2, 10, 7], strides = [1, 1, 1]} : vector<2x10x25xf32> to vector<2x10x7xf32>
    %cst_158 = arith.constant dense<0xFF800000> : vector<2x10xf32>
    %214 = vector.multi_reduction <maximumf>, %213, %cst_158 [2] : vector<2x10x7xf32> to vector<2x10xf32>
    %215 = vector.shape_cast %214 : vector<2x10xf32> to vector<2x10x1xf32>
    %c0_159 = arith.constant 0 : index
    %c0_160 = arith.constant 0 : index
    %c2_161 = arith.constant 2 : index
    %216 = vector.load %arg7[%c0_159, %c0_160, %c2_161] : memref<2x10x10xf32, #tpu.memory_space<vmem>>, vector<2x10x1xf32>
    tpu.vector_store %arg7[%c0_159, %c0_160, %c2_161], %215 {strides = array<i32>} : memref<2x10x10xf32, #tpu.memory_space<vmem>>, vector<2x10x1xf32>,
    %217 = vector.extract_strided_slice %204 {offsets = [0, 0, 6], sizes = [2, 10, 7], strides = [1, 1, 1]} : vector<2x10x25xf32> to vector<2x10x7xf32>
    %cst_162 = arith.constant dense<0xFF800000> : vector<2x10xf32>
    %218 = vector.multi_reduction <maximumf>, %217, %cst_162 [2] : vector<2x10x7xf32> to vector<2x10xf32>
    %219 = vector.shape_cast %218 : vector<2x10xf32> to vector<2x10x1xf32>
    %c0_163 = arith.constant 0 : index
    %c0_164 = arith.constant 0 : index
    %c3_165 = arith.constant 3 : index
    %220 = vector.load %arg7[%c0_163, %c0_164, %c3_165] : memref<2x10x10xf32, #tpu.memory_space<vmem>>, vector<2x10x1xf32>
    tpu.vector_store %arg7[%c0_163, %c0_164, %c3_165], %219 {strides = array<i32>} : memref<2x10x10xf32, #tpu.memory_space<vmem>>, vector<2x10x1xf32>,
    %221 = vector.extract_strided_slice %204 {offsets = [0, 0, 8], sizes = [2, 10, 7], strides = [1, 1, 1]} : vector<2x10x25xf32> to vector<2x10x7xf32>
    %cst_166 = arith.constant dense<0xFF800000> : vector<2x10xf32>
    %222 = vector.multi_reduction <maximumf>, %221, %cst_166 [2] : vector<2x10x7xf32> to vector<2x10xf32>
    %223 = vector.shape_cast %222 : vector<2x10xf32> to vector<2x10x1xf32>
    %c0_167 = arith.constant 0 : index
    %c0_168 = arith.constant 0 : index
    %c4_169 = arith.constant 4 : index
    %224 = vector.load %arg7[%c0_167, %c0_168, %c4_169] : memref<2x10x10xf32, #tpu.memory_space<vmem>>, vector<2x10x1xf32>
    tpu.vector_store %arg7[%c0_167, %c0_168, %c4_169], %223 {strides = array<i32>} : memref<2x10x10xf32, #tpu.memory_space<vmem>>, vector<2x10x1xf32>,
    %225 = vector.extract_strided_slice %204 {offsets = [0, 0, 10], sizes = [2, 10, 7], strides = [1, 1, 1]} : vector<2x10x25xf32> to vector<2x10x7xf32>
    %cst_170 = arith.constant dense<0xFF800000> : vector<2x10xf32>
    %226 = vector.multi_reduction <maximumf>, %225, %cst_170 [2] : vector<2x10x7xf32> to vector<2x10xf32>
    %227 = vector.shape_cast %226 : vector<2x10xf32> to vector<2x10x1xf32>
    %c0_171 = arith.constant 0 : index
    %c0_172 = arith.constant 0 : index
    %c5_173 = arith.constant 5 : index
    %228 = vector.load %arg7[%c0_171, %c0_172, %c5_173] : memref<2x10x10xf32, #tpu.memory_space<vmem>>, vector<2x10x1xf32>
    tpu.vector_store %arg7[%c0_171, %c0_172, %c5_173], %227 {strides = array<i32>} : memref<2x10x10xf32, #tpu.memory_space<vmem>>, vector<2x10x1xf32>,
    %229 = vector.extract_strided_slice %204 {offsets = [0, 0, 12], sizes = [2, 10, 7], strides = [1, 1, 1]} : vector<2x10x25xf32> to vector<2x10x7xf32>
    %cst_174 = arith.constant dense<0xFF800000> : vector<2x10xf32>
    %230 = vector.multi_reduction <maximumf>, %229, %cst_174 [2] : vector<2x10x7xf32> to vector<2x10xf32>
    %231 = vector.shape_cast %230 : vector<2x10xf32> to vector<2x10x1xf32>
    %c0_175 = arith.constant 0 : index
    %c0_176 = arith.constant 0 : index
    %c6_177 = arith.constant 6 : index
    %232 = vector.load %arg7[%c0_175, %c0_176, %c6_177] : memref<2x10x10xf32, #tpu.memory_space<vmem>>, vector<2x10x1xf32>
    tpu.vector_store %arg7[%c0_175, %c0_176, %c6_177], %231 {strides = array<i32>} : memref<2x10x10xf32, #tpu.memory_space<vmem>>, vector<2x10x1xf32>,
    %233 = vector.extract_strided_slice %204 {offsets = [0, 0, 14], sizes = [2, 10, 7], strides = [1, 1, 1]} : vector<2x10x25xf32> to vector<2x10x7xf32>
    %cst_178 = arith.constant dense<0xFF800000> : vector<2x10xf32>
    %234 = vector.multi_reduction <maximumf>, %233, %cst_178 [2] : vector<2x10x7xf32> to vector<2x10xf32>
    %235 = vector.shape_cast %234 : vector<2x10xf32> to vector<2x10x1xf32>
    %c0_179 = arith.constant 0 : index
    %c0_180 = arith.constant 0 : index
    %c7_181 = arith.constant 7 : index
    %236 = vector.load %arg7[%c0_179, %c0_180, %c7_181] : memref<2x10x10xf32, #tpu.memory_space<vmem>>, vector<2x10x1xf32>
    tpu.vector_store %arg7[%c0_179, %c0_180, %c7_181], %235 {strides = array<i32>} : memref<2x10x10xf32, #tpu.memory_space<vmem>>, vector<2x10x1xf32>,
    %237 = vector.extract_strided_slice %204 {offsets = [0, 0, 16], sizes = [2, 10, 7], strides = [1, 1, 1]} : vector<2x10x25xf32> to vector<2x10x7xf32>
    %cst_182 = arith.constant dense<0xFF800000> : vector<2x10xf32>
    %238 = vector.multi_reduction <maximumf>, %237, %cst_182 [2] : vector<2x10x7xf32> to vector<2x10xf32>
    %239 = vector.shape_cast %238 : vector<2x10xf32> to vector<2x10x1xf32>
    %c0_183 = arith.constant 0 : index
    %c0_184 = arith.constant 0 : index
    %c8_185 = arith.constant 8 : index
    %240 = vector.load %arg7[%c0_183, %c0_184, %c8_185] : memref<2x10x10xf32, #tpu.memory_space<vmem>>, vector<2x10x1xf32>
    tpu.vector_store %arg7[%c0_183, %c0_184, %c8_185], %239 {strides = array<i32>} : memref<2x10x10xf32, #tpu.memory_space<vmem>>, vector<2x10x1xf32>,
    %241 = vector.extract_strided_slice %204 {offsets = [0, 0, 18], sizes = [2, 10, 7], strides = [1, 1, 1]} : vector<2x10x25xf32> to vector<2x10x7xf32>
    %cst_186 = arith.constant dense<0xFF800000> : vector<2x10xf32>
    %242 = vector.multi_reduction <maximumf>, %241, %cst_186 [2] : vector<2x10x7xf32> to vector<2x10xf32>
    %243 = vector.shape_cast %242 : vector<2x10xf32> to vector<2x10x1xf32>
    %c0_187 = arith.constant 0 : index
    %c0_188 = arith.constant 0 : index
    %c9_189 = arith.constant 9 : index
    %244 = vector.load %arg7[%c0_187, %c0_188, %c9_189] : memref<2x10x10xf32, #tpu.memory_space<vmem>>, vector<2x10x1xf32>
    tpu.vector_store %arg7[%c0_187, %c0_188, %c9_189], %243 {strides = array<i32>} : memref<2x10x10xf32, #tpu.memory_space<vmem>>, vector<2x10x1xf32>,
    %c0_190 = arith.constant 0 : index
    %c0_191 = arith.constant 0 : index
    %c0_192 = arith.constant 0 : index
    %245 = vector.load %arg7[%c0_190, %c0_191, %c0_192] : memref<2x10x10xf32, #tpu.memory_space<vmem>>, vector<2x10x10xf32>
    %c37 = arith.constant 37 : index
    %246 = memref.load %arg1[%c37] : memref<48xf32, #tpu.memory_space<smem>>
    %c28 = arith.constant 28 : index
    %247 = memref.load %arg1[%c28] : memref<48xf32, #tpu.memory_space<smem>>
    %248 = vector.extract_strided_slice %245 {offsets = [0, 0, 0], sizes = [2, 8, 8], strides = [1, 1, 1]} : vector<2x10x10xf32> to vector<2x8x8xf32>
    %249 = vector.broadcast %247 : f32 to vector<2x8x8xf32>
    %250 = arith.mulf %249, %248 : vector<2x8x8xf32>
    %251 = vector.broadcast %246 : f32 to vector<2x8x8xf32>
    %252 = arith.addf %251, %250 : vector<2x8x8xf32>
    %c29 = arith.constant 29 : index
    %253 = memref.load %arg1[%c29] : memref<48xf32, #tpu.memory_space<smem>>
    %254 = vector.extract_strided_slice %245 {offsets = [0, 0, 1], sizes = [2, 8, 8], strides = [1, 1, 1]} : vector<2x10x10xf32> to vector<2x8x8xf32>
    %255 = vector.broadcast %253 : f32 to vector<2x8x8xf32>
    %256 = arith.mulf %255, %254 : vector<2x8x8xf32>
    %257 = arith.addf %252, %256 : vector<2x8x8xf32>
    %c30 = arith.constant 30 : index
    %258 = memref.load %arg1[%c30] : memref<48xf32, #tpu.memory_space<smem>>
    %259 = vector.extract_strided_slice %245 {offsets = [0, 0, 2], sizes = [2, 8, 8], strides = [1, 1, 1]} : vector<2x10x10xf32> to vector<2x8x8xf32>
    %260 = vector.broadcast %258 : f32 to vector<2x8x8xf32>
    %261 = arith.mulf %260, %259 : vector<2x8x8xf32>
    %262 = arith.addf %257, %261 : vector<2x8x8xf32>
    %c31 = arith.constant 31 : index
    %263 = memref.load %arg1[%c31] : memref<48xf32, #tpu.memory_space<smem>>
    %264 = vector.extract_strided_slice %245 {offsets = [0, 1, 0], sizes = [2, 8, 8], strides = [1, 1, 1]} : vector<2x10x10xf32> to vector<2x8x8xf32>
    %265 = vector.broadcast %263 : f32 to vector<2x8x8xf32>
    %266 = arith.mulf %265, %264 : vector<2x8x8xf32>
    %267 = arith.addf %262, %266 : vector<2x8x8xf32>
    %c32 = arith.constant 32 : index
    %268 = memref.load %arg1[%c32] : memref<48xf32, #tpu.memory_space<smem>>
    %269 = vector.extract_strided_slice %245 {offsets = [0, 1, 1], sizes = [2, 8, 8], strides = [1, 1, 1]} : vector<2x10x10xf32> to vector<2x8x8xf32>
    %270 = vector.broadcast %268 : f32 to vector<2x8x8xf32>
    %271 = arith.mulf %270, %269 : vector<2x8x8xf32>
    %272 = arith.addf %267, %271 : vector<2x8x8xf32>
    %c33 = arith.constant 33 : index
    %273 = memref.load %arg1[%c33] : memref<48xf32, #tpu.memory_space<smem>>
    %274 = vector.extract_strided_slice %245 {offsets = [0, 1, 2], sizes = [2, 8, 8], strides = [1, 1, 1]} : vector<2x10x10xf32> to vector<2x8x8xf32>
    %275 = vector.broadcast %273 : f32 to vector<2x8x8xf32>
    %276 = arith.mulf %275, %274 : vector<2x8x8xf32>
    %277 = arith.addf %272, %276 : vector<2x8x8xf32>
    %c34 = arith.constant 34 : index
    %278 = memref.load %arg1[%c34] : memref<48xf32, #tpu.memory_space<smem>>
    %279 = vector.extract_strided_slice %245 {offsets = [0, 2, 0], sizes = [2, 8, 8], strides = [1, 1, 1]} : vector<2x10x10xf32> to vector<2x8x8xf32>
    %280 = vector.broadcast %278 : f32 to vector<2x8x8xf32>
    %281 = arith.mulf %280, %279 : vector<2x8x8xf32>
    %282 = arith.addf %277, %281 : vector<2x8x8xf32>
    %c35 = arith.constant 35 : index
    %283 = memref.load %arg1[%c35] : memref<48xf32, #tpu.memory_space<smem>>
    %284 = vector.extract_strided_slice %245 {offsets = [0, 2, 1], sizes = [2, 8, 8], strides = [1, 1, 1]} : vector<2x10x10xf32> to vector<2x8x8xf32>
    %285 = vector.broadcast %283 : f32 to vector<2x8x8xf32>
    %286 = arith.mulf %285, %284 : vector<2x8x8xf32>
    %287 = arith.addf %282, %286 : vector<2x8x8xf32>
    %c36 = arith.constant 36 : index
    %288 = memref.load %arg1[%c36] : memref<48xf32, #tpu.memory_space<smem>>
    %289 = vector.extract_strided_slice %245 {offsets = [0, 2, 2], sizes = [2, 8, 8], strides = [1, 1, 1]} : vector<2x10x10xf32> to vector<2x8x8xf32>
    %290 = vector.broadcast %288 : f32 to vector<2x8x8xf32>
    %291 = arith.mulf %290, %289 : vector<2x8x8xf32>
    %292 = arith.addf %287, %291 : vector<2x8x8xf32>
    %293 = vector.extract_strided_slice %292 {offsets = [0, 0, 0], sizes = [2, 2, 8], strides = [1, 1, 1]} : vector<2x8x8xf32> to vector<2x2x8xf32>
    %cst_193 = arith.constant dense<0xFF800000> : vector<2x8xf32>
    %294 = vector.multi_reduction <maximumf>, %293, %cst_193 [1] : vector<2x2x8xf32> to vector<2x8xf32>
    %295 = vector.shape_cast %294 : vector<2x8xf32> to vector<2x1x8xf32>
    %c0_194 = arith.constant 0 : index
    %c0_195 = arith.constant 0 : index
    %c0_196 = arith.constant 0 : index
    %296 = vector.load %arg8[%c0_194, %c0_195, %c0_196] : memref<2x4x8xf32, #tpu.memory_space<vmem>>, vector<2x1x8xf32>
    tpu.vector_store %arg8[%c0_194, %c0_195, %c0_196], %295 {strides = array<i32>} : memref<2x4x8xf32, #tpu.memory_space<vmem>>, vector<2x1x8xf32>,
    %297 = vector.extract_strided_slice %292 {offsets = [0, 2, 0], sizes = [2, 2, 8], strides = [1, 1, 1]} : vector<2x8x8xf32> to vector<2x2x8xf32>
    %cst_197 = arith.constant dense<0xFF800000> : vector<2x8xf32>
    %298 = vector.multi_reduction <maximumf>, %297, %cst_197 [1] : vector<2x2x8xf32> to vector<2x8xf32>
    %299 = vector.shape_cast %298 : vector<2x8xf32> to vector<2x1x8xf32>
    %c0_198 = arith.constant 0 : index
    %c1_199 = arith.constant 1 : index
    %c0_200 = arith.constant 0 : index
    %300 = vector.load %arg8[%c0_198, %c1_199, %c0_200] : memref<2x4x8xf32, #tpu.memory_space<vmem>>, vector<2x1x8xf32>
    tpu.vector_store %arg8[%c0_198, %c1_199, %c0_200], %299 {strides = array<i32>} : memref<2x4x8xf32, #tpu.memory_space<vmem>>, vector<2x1x8xf32>,
    %301 = vector.extract_strided_slice %292 {offsets = [0, 4, 0], sizes = [2, 2, 8], strides = [1, 1, 1]} : vector<2x8x8xf32> to vector<2x2x8xf32>
    %cst_201 = arith.constant dense<0xFF800000> : vector<2x8xf32>
    %302 = vector.multi_reduction <maximumf>, %301, %cst_201 [1] : vector<2x2x8xf32> to vector<2x8xf32>
    %303 = vector.shape_cast %302 : vector<2x8xf32> to vector<2x1x8xf32>
    %c0_202 = arith.constant 0 : index
    %c2_203 = arith.constant 2 : index
    %c0_204 = arith.constant 0 : index
    %304 = vector.load %arg8[%c0_202, %c2_203, %c0_204] : memref<2x4x8xf32, #tpu.memory_space<vmem>>, vector<2x1x8xf32>
    tpu.vector_store %arg8[%c0_202, %c2_203, %c0_204], %303 {strides = array<i32>} : memref<2x4x8xf32, #tpu.memory_space<vmem>>, vector<2x1x8xf32>,
    %305 = vector.extract_strided_slice %292 {offsets = [0, 6, 0], sizes = [2, 2, 8], strides = [1, 1, 1]} : vector<2x8x8xf32> to vector<2x2x8xf32>
    %cst_205 = arith.constant dense<0xFF800000> : vector<2x8xf32>
    %306 = vector.multi_reduction <maximumf>, %305, %cst_205 [1] : vector<2x2x8xf32> to vector<2x8xf32>
    %307 = vector.shape_cast %306 : vector<2x8xf32> to vector<2x1x8xf32>
    %c0_206 = arith.constant 0 : index
    %c3_207 = arith.constant 3 : index
    %c0_208 = arith.constant 0 : index
    %308 = vector.load %arg8[%c0_206, %c3_207, %c0_208] : memref<2x4x8xf32, #tpu.memory_space<vmem>>, vector<2x1x8xf32>
    tpu.vector_store %arg8[%c0_206, %c3_207, %c0_208], %307 {strides = array<i32>} : memref<2x4x8xf32, #tpu.memory_space<vmem>>, vector<2x1x8xf32>,
    %c0_209 = arith.constant 0 : index
    %c0_210 = arith.constant 0 : index
    %c0_211 = arith.constant 0 : index
    %309 = vector.load %arg8[%c0_209, %c0_210, %c0_211] : memref<2x4x8xf32, #tpu.memory_space<vmem>>, vector<2x4x8xf32>
    %310 = vector.extract_strided_slice %309 {offsets = [0, 0, 0], sizes = [2, 4, 2], strides = [1, 1, 1]} : vector<2x4x8xf32> to vector<2x4x2xf32>
    %cst_212 = arith.constant dense<0xFF800000> : vector<2x4xf32>
    %311 = vector.multi_reduction <maximumf>, %310, %cst_212 [2] : vector<2x4x2xf32> to vector<2x4xf32>
    %312 = vector.shape_cast %311 : vector<2x4xf32> to vector<2x4x1xf32>
    %c0_213 = arith.constant 0 : index
    %c0_214 = arith.constant 0 : index
    %c0_215 = arith.constant 0 : index
    %313 = vector.load %arg9[%c0_213, %c0_214, %c0_215] : memref<2x4x4xf32, #tpu.memory_space<vmem>>, vector<2x4x1xf32>
    tpu.vector_store %arg9[%c0_213, %c0_214, %c0_215], %312 {strides = array<i32>} : memref<2x4x4xf32, #tpu.memory_space<vmem>>, vector<2x4x1xf32>,
    %314 = vector.extract_strided_slice %309 {offsets = [0, 0, 2], sizes = [2, 4, 2], strides = [1, 1, 1]} : vector<2x4x8xf32> to vector<2x4x2xf32>
    %cst_216 = arith.constant dense<0xFF800000> : vector<2x4xf32>
    %315 = vector.multi_reduction <maximumf>, %314, %cst_216 [2] : vector<2x4x2xf32> to vector<2x4xf32>
    %316 = vector.shape_cast %315 : vector<2x4xf32> to vector<2x4x1xf32>
    %c0_217 = arith.constant 0 : index
    %c0_218 = arith.constant 0 : index
    %c1_219 = arith.constant 1 : index
    %317 = vector.load %arg9[%c0_217, %c0_218, %c1_219] : memref<2x4x4xf32, #tpu.memory_space<vmem>>, vector<2x4x1xf32>
    tpu.vector_store %arg9[%c0_217, %c0_218, %c1_219], %316 {strides = array<i32>} : memref<2x4x4xf32, #tpu.memory_space<vmem>>, vector<2x4x1xf32>,
    %318 = vector.extract_strided_slice %309 {offsets = [0, 0, 4], sizes = [2, 4, 2], strides = [1, 1, 1]} : vector<2x4x8xf32> to vector<2x4x2xf32>
    %cst_220 = arith.constant dense<0xFF800000> : vector<2x4xf32>
    %319 = vector.multi_reduction <maximumf>, %318, %cst_220 [2] : vector<2x4x2xf32> to vector<2x4xf32>
    %320 = vector.shape_cast %319 : vector<2x4xf32> to vector<2x4x1xf32>
    %c0_221 = arith.constant 0 : index
    %c0_222 = arith.constant 0 : index
    %c2_223 = arith.constant 2 : index
    %321 = vector.load %arg9[%c0_221, %c0_222, %c2_223] : memref<2x4x4xf32, #tpu.memory_space<vmem>>, vector<2x4x1xf32>
    tpu.vector_store %arg9[%c0_221, %c0_222, %c2_223], %320 {strides = array<i32>} : memref<2x4x4xf32, #tpu.memory_space<vmem>>, vector<2x4x1xf32>,
    %322 = vector.extract_strided_slice %309 {offsets = [0, 0, 6], sizes = [2, 4, 2], strides = [1, 1, 1]} : vector<2x4x8xf32> to vector<2x4x2xf32>
    %cst_224 = arith.constant dense<0xFF800000> : vector<2x4xf32>
    %323 = vector.multi_reduction <maximumf>, %322, %cst_224 [2] : vector<2x4x2xf32> to vector<2x4xf32>
    %324 = vector.shape_cast %323 : vector<2x4xf32> to vector<2x4x1xf32>
    %c0_225 = arith.constant 0 : index
    %c0_226 = arith.constant 0 : index
    %c3_227 = arith.constant 3 : index
    %325 = vector.load %arg9[%c0_225, %c0_226, %c3_227] : memref<2x4x4xf32, #tpu.memory_space<vmem>>, vector<2x4x1xf32>
    tpu.vector_store %arg9[%c0_225, %c0_226, %c3_227], %324 {strides = array<i32>} : memref<2x4x4xf32, #tpu.memory_space<vmem>>, vector<2x4x1xf32>,
    %c0_228 = arith.constant 0 : index
    %c0_229 = arith.constant 0 : index
    %c0_230 = arith.constant 0 : index
    %326 = vector.load %arg9[%c0_228, %c0_229, %c0_230] : memref<2x4x4xf32, #tpu.memory_space<vmem>>, vector<2x4x4xf32>
    %c47 = arith.constant 47 : index
    %327 = memref.load %arg1[%c47] : memref<48xf32, #tpu.memory_space<smem>>
    %c38 = arith.constant 38 : index
    %328 = memref.load %arg1[%c38] : memref<48xf32, #tpu.memory_space<smem>>
    %329 = vector.extract_strided_slice %326 {offsets = [0, 0, 0], sizes = [2, 2, 2], strides = [1, 1, 1]} : vector<2x4x4xf32> to vector<2x2x2xf32>
    %330 = vector.broadcast %328 : f32 to vector<2x2x2xf32>
    %331 = arith.mulf %330, %329 : vector<2x2x2xf32>
    %332 = vector.broadcast %327 : f32 to vector<2x2x2xf32>
    %333 = arith.addf %332, %331 : vector<2x2x2xf32>
    %c39 = arith.constant 39 : index
    %334 = memref.load %arg1[%c39] : memref<48xf32, #tpu.memory_space<smem>>
    %335 = vector.extract_strided_slice %326 {offsets = [0, 0, 1], sizes = [2, 2, 2], strides = [1, 1, 1]} : vector<2x4x4xf32> to vector<2x2x2xf32>
    %336 = vector.broadcast %334 : f32 to vector<2x2x2xf32>
    %337 = arith.mulf %336, %335 : vector<2x2x2xf32>
    %338 = arith.addf %333, %337 : vector<2x2x2xf32>
    %c40 = arith.constant 40 : index
    %339 = memref.load %arg1[%c40] : memref<48xf32, #tpu.memory_space<smem>>
    %340 = vector.extract_strided_slice %326 {offsets = [0, 0, 2], sizes = [2, 2, 2], strides = [1, 1, 1]} : vector<2x4x4xf32> to vector<2x2x2xf32>
    %341 = vector.broadcast %339 : f32 to vector<2x2x2xf32>
    %342 = arith.mulf %341, %340 : vector<2x2x2xf32>
    %343 = arith.addf %338, %342 : vector<2x2x2xf32>
    %c41 = arith.constant 41 : index
    %344 = memref.load %arg1[%c41] : memref<48xf32, #tpu.memory_space<smem>>
    %345 = vector.extract_strided_slice %326 {offsets = [0, 1, 0], sizes = [2, 2, 2], strides = [1, 1, 1]} : vector<2x4x4xf32> to vector<2x2x2xf32>
    %346 = vector.broadcast %344 : f32 to vector<2x2x2xf32>
    %347 = arith.mulf %346, %345 : vector<2x2x2xf32>
    %348 = arith.addf %343, %347 : vector<2x2x2xf32>
    %c42 = arith.constant 42 : index
    %349 = memref.load %arg1[%c42] : memref<48xf32, #tpu.memory_space<smem>>
    %350 = vector.extract_strided_slice %326 {offsets = [0, 1, 1], sizes = [2, 2, 2], strides = [1, 1, 1]} : vector<2x4x4xf32> to vector<2x2x2xf32>
    %351 = vector.broadcast %349 : f32 to vector<2x2x2xf32>
    %352 = arith.mulf %351, %350 : vector<2x2x2xf32>
    %353 = arith.addf %348, %352 : vector<2x2x2xf32>
    %c43 = arith.constant 43 : index
    %354 = memref.load %arg1[%c43] : memref<48xf32, #tpu.memory_space<smem>>
    %355 = vector.extract_strided_slice %326 {offsets = [0, 1, 2], sizes = [2, 2, 2], strides = [1, 1, 1]} : vector<2x4x4xf32> to vector<2x2x2xf32>
    %356 = vector.broadcast %354 : f32 to vector<2x2x2xf32>
    %357 = arith.mulf %356, %355 : vector<2x2x2xf32>
    %358 = arith.addf %353, %357 : vector<2x2x2xf32>
    %c44 = arith.constant 44 : index
    %359 = memref.load %arg1[%c44] : memref<48xf32, #tpu.memory_space<smem>>
    %360 = vector.extract_strided_slice %326 {offsets = [0, 2, 0], sizes = [2, 2, 2], strides = [1, 1, 1]} : vector<2x4x4xf32> to vector<2x2x2xf32>
    %361 = vector.broadcast %359 : f32 to vector<2x2x2xf32>
    %362 = arith.mulf %361, %360 : vector<2x2x2xf32>
    %363 = arith.addf %358, %362 : vector<2x2x2xf32>
    %c45 = arith.constant 45 : index
    %364 = memref.load %arg1[%c45] : memref<48xf32, #tpu.memory_space<smem>>
    %365 = vector.extract_strided_slice %326 {offsets = [0, 2, 1], sizes = [2, 2, 2], strides = [1, 1, 1]} : vector<2x4x4xf32> to vector<2x2x2xf32>
    %366 = vector.broadcast %364 : f32 to vector<2x2x2xf32>
    %367 = arith.mulf %366, %365 : vector<2x2x2xf32>
    %368 = arith.addf %363, %367 : vector<2x2x2xf32>
    %c46 = arith.constant 46 : index
    %369 = memref.load %arg1[%c46] : memref<48xf32, #tpu.memory_space<smem>>
    %370 = vector.extract_strided_slice %326 {offsets = [0, 2, 2], sizes = [2, 2, 2], strides = [1, 1, 1]} : vector<2x4x4xf32> to vector<2x2x2xf32>
    %371 = vector.broadcast %369 : f32 to vector<2x2x2xf32>
    %372 = arith.mulf %371, %370 : vector<2x2x2xf32>
    %373 = arith.addf %368, %372 : vector<2x2x2xf32>
    %374 = vector.extract_strided_slice %373 {offsets = [0, 0, 0], sizes = [2, 1, 2], strides = [1, 1, 1]} : vector<2x2x2xf32> to vector<2x1x2xf32>
    %375 = vector.shape_cast %374 : vector<2x1x2xf32> to vector<2x2xf32>
    %c0_231 = arith.constant 0 : index
    %c0_232 = arith.constant 0 : index
    %376 = vector.load %arg10[%c0_231, %c0_232] : memref<2x4xf32, #tpu.memory_space<vmem>>, vector<2x2xf32>
    tpu.vector_store %arg10[%c0_231, %c0_232], %375 {strides = array<i32>} : memref<2x4xf32, #tpu.memory_space<vmem>>, vector<2x2xf32>,
    %377 = vector.extract_strided_slice %373 {offsets = [0, 1, 0], sizes = [2, 1, 2], strides = [1, 1, 1]} : vector<2x2x2xf32> to vector<2x1x2xf32>
    %378 = vector.shape_cast %377 : vector<2x1x2xf32> to vector<2x2xf32>
    %c0_233 = arith.constant 0 : index
    %c2_234 = arith.constant 2 : index
    %379 = vector.load %arg10[%c0_233, %c2_234] : memref<2x4xf32, #tpu.memory_space<vmem>>, vector<2x2xf32>
    tpu.vector_store %arg10[%c0_233, %c2_234], %378 {strides = array<i32>} : memref<2x4xf32, #tpu.memory_space<vmem>>, vector<2x2xf32>,
    %c0_235 = arith.constant 0 : index
    %c0_236 = arith.constant 0 : index
    %380 = vector.load %arg10[%c0_235, %c0_236] : memref<2x4xf32, #tpu.memory_space<vmem>>, vector<2x4xf32>
    %c0_237 = arith.constant 0 : index
    %c0_238 = arith.constant 0 : index
    %381 = vector.load %arg2[%c0_237, %c0_238] : memref<5x8xf32, #tpu.memory_space<vmem>>, vector<5x8xf32>
    %c0_239 = arith.constant 0 : index
    %c0_240 = arith.constant 0 : index
    %382 = vector.load %arg3[%c0_239, %c0_240] : memref<9x7xf32, #tpu.memory_space<vmem>>, vector<9x7xf32>
    %383 = vector.shape_cast %380 : vector<2x4xf32> to vector<2x4x1xf32>
    %384 = vector.extract_strided_slice %381 {offsets = [0, 0], sizes = [4, 8], strides = [1, 1]} : vector<5x8xf32> to vector<4x8xf32>
    %385 = vector.shape_cast %384 : vector<4x8xf32> to vector<1x4x8xf32>
    %386 = vector.broadcast %383 : vector<2x4x1xf32> to vector<2x4x8xf32>
    %387 = vector.broadcast %385 : vector<1x4x8xf32> to vector<2x4x8xf32>
    %388 = arith.mulf %386, %387 : vector<2x4x8xf32>
    %cst_241 = arith.constant dense<0.000000e+00> : vector<2x8xf32>
    %389 = vector.multi_reduction <add>, %388, %cst_241 [1] : vector<2x4x8xf32> to vector<2x8xf32>
    %390 = vector.extract_strided_slice %381 {offsets = [4, 0], sizes = [1, 8], strides = [1, 1]} : vector<5x8xf32> to vector<1x8xf32>
    %391 = vector.broadcast %390 : vector<1x8xf32> to vector<2x8xf32>
    %392 = arith.addf %389, %391 : vector<2x8xf32>
    %cst_242 = arith.constant 0.000000e+00 : f32
    %393 = vector.broadcast %cst_242 : f32 to vector<2x8xf32>
    %394 = arith.maximumf %392, %393 : vector<2x8xf32>
    %395 = vector.shape_cast %394 : vector<2x8xf32> to vector<2x8x1xf32>
    %396 = vector.extract_strided_slice %382 {offsets = [0, 0], sizes = [8, 7], strides = [1, 1]} : vector<9x7xf32> to vector<8x7xf32>
    %397 = vector.shape_cast %396 : vector<8x7xf32> to vector<1x8x7xf32>
    %398 = vector.broadcast %395 : vector<2x8x1xf32> to vector<2x8x7xf32>
    %399 = vector.broadcast %397 : vector<1x8x7xf32> to vector<2x8x7xf32>
    %400 = arith.mulf %398, %399 : vector<2x8x7xf32>
    %cst_243 = arith.constant dense<0.000000e+00> : vector<2x7xf32>
    %401 = vector.multi_reduction <add>, %400, %cst_243 [1] : vector<2x8x7xf32> to vector<2x7xf32>
    %402 = vector.extract_strided_slice %382 {offsets = [8, 0], sizes = [1, 7], strides = [1, 1]} : vector<9x7xf32> to vector<1x7xf32>
    %403 = vector.broadcast %402 : vector<1x7xf32> to vector<2x7xf32>
    %404 = arith.addf %401, %403 : vector<2x7xf32>
    %405 = vector.extract_strided_slice %404 {offsets = [0, 0], sizes = [2, 6], strides = [1, 1]} : vector<2x7xf32> to vector<2x6xf32>
    %c0_244 = arith.constant 0 : index
    %c0_245 = arith.constant 0 : index
    %406 = vector.load %arg4[%c0_244, %c0_245] : memref<2x6xf32, #tpu.memory_space<vmem>>, vector<2x6xf32>
    tpu.vector_store %arg4[%c0_244, %c0_245], %405 {strides = array<i32>} : memref<2x6xf32, #tpu.memory_space<vmem>>, vector<2x6xf32>,
    %407 = vector.extract_strided_slice %404 {offsets = [0, 6], sizes = [2, 1], strides = [1, 1]} : vector<2x7xf32> to vector<2x1xf32>
    %c0_246 = arith.constant 0 : index
    %c0_247 = arith.constant 0 : index
    %408 = vector.load %arg5[%c0_246, %c0_247] : memref<2x1xf32, #tpu.memory_space<vmem>>, vector<2x1xf32>
    tpu.vector_store %arg5[%c0_246, %c0_247], %407 {strides = array<i32>} : memref<2x1xf32, #tpu.memory_space<vmem>>, vector<2x1xf32>,
    return
  }
}

</mosaic_0001>

<llo_original>
// kernel: forward.1
$region0: #{forward.1}
  #allocation0 [shape = 'u32[]', space=smem, size = 0x4, offset = 0x4, fixed_abs, tag = 'smem constant byte address 0x4 - core index']
  #allocation1 [shape = 'u32[72,128]{1,0:T(1,128)}', space=vmem, size = 0x9000, scoped, tag = 'internal scratch']
  #allocation2 [shape = 'f32[2,10,25]{2,1,0:T(8,128)}', space=vmem, size = 0x4000, scoped, tag = 'scratch operand']
  #allocation3 [shape = 'f32[2,10,10]{2,1,0:T(8,128)}', space=vmem, size = 0x4000, scoped, tag = 'scratch operand']
  #allocation4 [shape = 'f32[2,4,8]{2,1,0:T(4,128)}', space=vmem, size = 0x1000, scoped, tag = 'scratch operand']
  #allocation5 [shape = 'f32[2,4,4]{2,1,0:T(4,128)}', space=vmem, size = 0x1000, scoped, tag = 'scratch operand']
  #allocation6 [shape = 'f32[2,4]{1,0:T(2,128)}', space=vmem, size = 0x400, scoped, tag = 'scratch operand']
  %s0 = inlined_call_operand.vmem [shape: f32[2,27,25,25], index: 0, kind: input, shape index: {}]
  %s1 = inlined_call_operand.vmem [shape: f32[48], index: 1, kind: input, shape index: {}]
  %s2 = inlined_call_operand.vmem [shape: f32[5,8], index: 2, kind: input, shape index: {}]
  %s3 = inlined_call_operand.vmem [shape: f32[9,7], index: 3, kind: input, shape index: {}]
  %s4 = inlined_call_operand.hbm [shape: f32[2,6], index: 4, kind: output, shape index: {0}]
  %s5 = inlined_call_operand.vmem [shape: f32[2,1], index: 5, kind: output, shape index: {1}]
  %6 = xla_tuple %s4, %s5
  %s7 = sld [smem:[#allocation0]]
  $region38: #{forward.1} parent=0
    _
  %s9 = ssub.s32 1, %s7
  %s10 = scalar_select 0, %s9, %s7
  $region1: #{forward.1} parent=0
    #allocation7 [shape = 'u8[512]{0}', space=smem, size = 0x200, scoped, tag = 'input window, operand 1, single buffered']
    #allocation8 [shape = 's32[1]{0}', space=sflag, size = 0x4, scoped, tag = 'scoped memory for forward.1']
    #allocation9 [shape = 's32[1]{0}', space=sflag, size = 0x4, scoped, tag = 'scoped memory for forward.1']
    #allocation10 [shape = 'u8[1024]{0}', space=vmem, size = 0x400, scoped, tag = 'output window, operand 0, single buffered']
    %11 = vsyncpa [#allocation9], 0
    %12 = vsyncpa [#allocation8], 0
    // Predicated region
    $region2: #{forward.1} parent=1 // pred_check
      _
    $region3: #{forward.1} parent=1 // pred_check_branch
      %14 = sbr.rel (0) target = $region5
    $region4: #{forward.1} parent=1 // pred_region
      _
    $region5: #{forward.1} parent=1 // pred_fallthru
      _
    // Predicated region
    $region6: #{forward.1} parent=1 // pred_check
      _
    $region7: #{forward.1} parent=1 // pred_check_branch
      %16 = sbr.rel (0) target = $region9
    $region8: #{forward.1} parent=1 // pred_region
      %18 = vsyncadd [#allocation9], 0
      %s20 = sshll.u32 %s1, 4
      %s21 = int_to_ptr.vmem [resolvable:$true] %s20
      %23 = dma.vmem_to_smem %s21, 16, [#allocation7], [#allocation9]
    $region9: #{forward.1} parent=1 // pred_fallthru
      _
    // Predicated region
    $region10: #{forward.1} parent=1 // pred_check
      _
    $region11: #{forward.1} parent=1 // pred_check_branch
      %25 = sbr.rel (0) target = $region13
    $region12: #{forward.1} parent=1 // pred_region
      _
    $region13: #{forward.1} parent=1 // pred_fallthru
      _
    // Predicated region
    $region14: #{forward.1} parent=1 // pred_check
      _
    $region15: #{forward.1} parent=1 // pred_check_branch
      %27 = sbr.rel (0) target = $region17
    $region16: #{forward.1} parent=1 // pred_region
      _
    $region17: #{forward.1} parent=1 // pred_fallthru
      _
    // Predicated region
    $region18: #{forward.1} parent=1 // pred_check
      _
    $region19: #{forward.1} parent=1 // pred_check_branch
      %29 = sbr.rel (0) target = $region21
    $region20: #{forward.1} parent=1 // pred_region
      %31 = dma.done [#allocation9], 16
    $region21: #{forward.1} parent=1 // pred_fallthru
      _
    %32 = sfence
    %s33 = sld [smem:[#allocation7 + $0x1b]]
    %s34 = sld [smem:[#allocation7]]
    %v35 = vld [vmem:[%s0] sm:$0xff]
    %v36 = vld [vmem:[%s0 + $0x8] sm:$0xff]
    %v37 = vld [vmem:[%s0 + $0x10] sm:$0xff]
    %v38 = vld [vmem:[%s0 + $0x18] sm:$0x1]
    %v39 = vld [vmem:[%s0 + $0x360] sm:$0xff]
    %v40 = vld [vmem:[%s0 + $0x368] sm:$0xff]
    %v41 = vld [vmem:[%s0 + $0x370] sm:$0xff]
    %v42 = vld [vmem:[%s0 + $0x378] sm:$0x1]
    %v43 = vstv %s34
    %v44 = vmul.f32 %v43, %v35
    %v45 = vmul.f32 %v43, %v36
    %v46 = vmul.f32 %v43, %v37
    %v47 = vmul.f32 %v43, %v38
    %v48 = vmul.f32 %v43, %v39
    %v49 = vmul.f32 %v43, %v40
    %v50 = vmul.f32 %v43, %v41
    %v51 = vmul.f32 %v43, %v42
    %v52 = vstv %s33
    %v53 = vadd.f32 %v52, %v44
    %v54 = vadd.f32 %v52, %v45
    %v55 = vadd.f32 %v52, %v46
    %v56 = vadd.f32 %v52, %v47
    %v57 = vadd.f32 %v52, %v48
    %v58 = vadd.f32 %v52, %v49
    %v59 = vadd.f32 %v52, %v50
    %v60 = vadd.f32 %v52, %v51
    %s61 = sld [smem:[#allocation7 + $0x1]]
    %s62 = scalar_lea.vmem %s0, 32
    %v63 = vld [vmem:[%s62] sm:$0xff]
    %v64 = vld [vmem:[%s62 + $0x8] sm:$0xff]
    %v65 = vld [vmem:[%s62 + $0x10] sm:$0xff]
    %v66 = vld [vmem:[%s62 + $0x18] sm:$0x1]
    %v67 = vld [vmem:[%s62 + $0x360] sm:$0xff]
    %v68 = vld [vmem:[%s62 + $0x368] sm:$0xff]
    %v69 = vld [vmem:[%s62 + $0x370] sm:$0xff]
    %v70 = vld [vmem:[%s62 + $0x378] sm:$0x1]
    %v71 = vstv %s61
    %v72 = vmul.f32 %v71, %v63
    %v73 = vmul.f32 %v71, %v64
    %v74 = vmul.f32 %v71, %v65
    %v75 = vmul.f32 %v71, %v66
    %v76 = vmul.f32 %v71, %v67
    %v77 = vmul.f32 %v71, %v68
    %v78 = vmul.f32 %v71, %v69
    %v79 = vmul.f32 %v71, %v70
    %v80 = vadd.f32 %v53, %v72
    %v81 = vadd.f32 %v54, %v73
    %v82 = vadd.f32 %v55, %v74
    %v83 = vadd.f32 %v56, %v75
    %v84 = vadd.f32 %v57, %v76
    %v85 = vadd.f32 %v58, %v77
    %v86 = vadd.f32 %v59, %v78
    %v87 = vadd.f32 %v60, %v79
    %s88 = sld [smem:[#allocation7 + $0x2]]
    %s89 = scalar_lea.vmem %s0, 64
    %v90 = vld [vmem:[%s89] sm:$0xff]
    %v91 = vld [vmem:[%s89 + $0x8] sm:$0xff]
    %v92 = vld [vmem:[%s89 + $0x10] sm:$0xff]
    %v93 = vld [vmem:[%s89 + $0x18] sm:$0x1]
    %v94 = vld [vmem:[%s89 + $0x360] sm:$0xff]
    %v95 = vld [vmem:[%s89 + $0x368] sm:$0xff]
    %v96 = vld [vmem:[%s89 + $0x370] sm:$0xff]
    %v97 = vld [vmem:[%s89 + $0x378] sm:$0x1]
    %v98 = vstv %s88
    %v99 = vmul.f32 %v98, %v90
    %v100 = vmul.f32 %v98, %v91
    %v101 = vmul.f32 %v98, %v92
    %v102 = vmul.f32 %v98, %v93
    %v103 = vmul.f32 %v98, %v94
    %v104 = vmul.f32 %v98, %v95
    %v105 = vmul.f32 %v98, %v96
    %v106 = vmul.f32 %v98, %v97
    %v107 = vadd.f32 %v80, %v99
    %v108 = vadd.f32 %v81, %v100
    %v109 = vadd.f32 %v82, %v101
    %v110 = vadd.f32 %v83, %v102
    %v111 = vadd.f32 %v84, %v103
    %v112 = vadd.f32 %v85, %v104
    %v113 = vadd.f32 %v86, %v105
    %v114 = vadd.f32 %v87, %v106
    %s115 = sld [smem:[#allocation7 + $0x3]]
    %s116 = scalar_lea.vmem %s0, 96
    %v117 = vld [vmem:[%s116] sm:$0xff]
    %v118 = vld [vmem:[%s116 + $0x8] sm:$0xff]
    %v119 = vld [vmem:[%s116 + $0x10] sm:$0xff]
    %v120 = vld [vmem:[%s116 + $0x18] sm:$0x1]
    %v121 = vld [vmem:[%s116 + $0x360] sm:$0xff]
    %v122 = vld [vmem:[%s116 + $0x368] sm:$0xff]
    %v123 = vld [vmem:[%s116 + $0x370] sm:$0xff]
    %v124 = vld [vmem:[%s116 + $0x378] sm:$0x1]
    %v125 = vstv %s115
    %v126 = vmul.f32 %v125, %v117
    %v127 = vmul.f32 %v125, %v118
    %v128 = vmul.f32 %v125, %v119
    %v129 = vmul.f32 %v125, %v120
    %v130 = vmul.f32 %v125, %v121
    %v131 = vmul.f32 %v125, %v122
    %v132 = vmul.f32 %v125, %v123
    %v133 = vmul.f32 %v125, %v124
    %v134 = vadd.f32 %v107, %v126
    %v135 = vadd.f32 %v108, %v127
    %v136 = vadd.f32 %v109, %v128
    %v137 = vadd.f32 %v110, %v129
    %v138 = vadd.f32 %v111, %v130
    %v139 = vadd.f32 %v112, %v131
    %v140 = vadd.f32 %v113, %v132
    %v141 = vadd.f32 %v114, %v133
    %s142 = sld [smem:[#allocation7 + $0x4]]
    %s143 = scalar_lea.vmem %s0, 128
    %v144 = vld [vmem:[%s143] sm:$0xff]
    %v145 = vld [vmem:[%s143 + $0x8] sm:$0xff]
    %v146 = vld [vmem:[%s143 + $0x10] sm:$0xff]
    %v147 = vld [vmem:[%s143 + $0x18] sm:$0x1]
    %v148 = vld [vmem:[%s143 + $0x360] sm:$0xff]
    %v149 = vld [vmem:[%s143 + $0x368] sm:$0xff]
    %v150 = vld [vmem:[%s143 + $0x370] sm:$0xff]
    %v151 = vld [vmem:[%s143 + $0x378] sm:$0x1]
    %v152 = vstv %s142
    %v153 = vmul.f32 %v152, %v144
    %v154 = vmul.f32 %v152, %v145
    %v155 = vmul.f32 %v152, %v146
    %v156 = vmul.f32 %v152, %v147
    %v157 = vmul.f32 %v152, %v148
    %v158 = vmul.f32 %v152, %v149
    %v159 = vmul.f32 %v152, %v150
    %v160 = vmul.f32 %v152, %v151
    %v161 = vadd.f32 %v134, %v153
    %v162 = vadd.f32 %v135, %v154
    %v163 = vadd.f32 %v136, %v155
    %v164 = vadd.f32 %v137, %v156
    %v165 = vadd.f32 %v138, %v157
    %v166 = vadd.f32 %v139, %v158
    %v167 = vadd.f32 %v140, %v159
    %v168 = vadd.f32 %v141, %v160
    %s169 = sld [smem:[#allocation7 + $0x5]]
    %s170 = scalar_lea.vmem %s0, 160
    %v171 = vld [vmem:[%s170] sm:$0xff]
    %v172 = vld [vmem:[%s170 + $0x8] sm:$0xff]
    %v173 = vld [vmem:[%s170 + $0x10] sm:$0xff]
    %v174 = vld [vmem:[%s170 + $0x18] sm:$0x1]
    %v175 = vld [vmem:[%s170 + $0x360] sm:$0xff]
    %v176 = vld [vmem:[%s170 + $0x368] sm:$0xff]
    %v177 = vld [vmem:[%s170 + $0x370] sm:$0xff]
    %v178 = vld [vmem:[%s170 + $0x378] sm:$0x1]
    %v179 = vstv %s169
    %v180 = vmul.f32 %v179, %v171
    %v181 = vmul.f32 %v179, %v172
    %v182 = vmul.f32 %v179, %v173
    %v183 = vmul.f32 %v179, %v174
    %v184 = vmul.f32 %v179, %v175
    %v185 = vmul.f32 %v179, %v176
    %v186 = vmul.f32 %v179, %v177
    %v187 = vmul.f32 %v179, %v178
    %v188 = vadd.f32 %v161, %v180
    %v189 = vadd.f32 %v162, %v181
    %v190 = vadd.f32 %v163, %v182
    %v191 = vadd.f32 %v164, %v183
    %v192 = vadd.f32 %v165, %v184
    %v193 = vadd.f32 %v166, %v185
    %v194 = vadd.f32 %v167, %v186
    %v195 = vadd.f32 %v168, %v187
    %s196 = sld [smem:[#allocation7 + $0x6]]
    %s197 = scalar_lea.vmem %s0, 192
    %v198 = vld [vmem:[%s197] sm:$0xff]
    %v199 = vld [vmem:[%s197 + $0x8] sm:$0xff]
    %v200 = vld [vmem:[%s197 + $0x10] sm:$0xff]
    %v201 = vld [vmem:[%s197 + $0x18] sm:$0x1]
    %v202 = vld [vmem:[%s197 + $0x360] sm:$0xff]
    %v203 = vld [vmem:[%s197 + $0x368] sm:$0xff]
    %v204 = vld [vmem:[%s197 + $0x370] sm:$0xff]
    %v205 = vld [vmem:[%s197 + $0x378] sm:$0x1]
    %v206 = vstv %s196
    %v207 = vmul.f32 %v206, %v198
    %v208 = vmul.f32 %v206, %v199
    %v209 = vmul.f32 %v206, %v200
    %v210 = vmul.f32 %v206, %v201
    %v211 = vmul.f32 %v206, %v202
    %v212 = vmul.f32 %v206, %v203
    %v213 = vmul.f32 %v206, %v204
    %v214 = vmul.f32 %v206, %v205
    %v215 = vadd.f32 %v188, %v207
    %v216 = vadd.f32 %v189, %v208
    %v217 = vadd.f32 %v190, %v209
    %v218 = vadd.f32 %v191, %v210
    %v219 = vadd.f32 %v192, %v211
    %v220 = vadd.f32 %v193, %v212
    %v221 = vadd.f32 %v194, %v213
    %v222 = vadd.f32 %v195, %v214
    %s223 = sld [smem:[#allocation7 + $0x7]]
    %s224 = scalar_lea.vmem %s0, 224
    %v225 = vld [vmem:[%s224] sm:$0xff]
    %v226 = vld [vmem:[%s224 + $0x8] sm:$0xff]
    %v227 = vld [vmem:[%s224 + $0x10] sm:$0xff]
    %v228 = vld [vmem:[%s224 + $0x18] sm:$0x1]
    %v229 = vld [vmem:[%s224 + $0x360] sm:$0xff]
    %v230 = vld [vmem:[%s224 + $0x368] sm:$0xff]
    %v231 = vld [vmem:[%s224 + $0x370] sm:$0xff]
    %v232 = vld [vmem:[%s224 + $0x378] sm:$0x1]
    %v233 = vstv %s223
    %v234 = vmul.f32 %v233, %v225
    %v235 = vmul.f32 %v233, %v226
    %v236 = vmul.f32 %v233, %v227
    %v237 = vmul.f32 %v233, %v228
    %v238 = vmul.f32 %v233, %v229
    %v239 = vmul.f32 %v233, %v230
    %v240 = vmul.f32 %v233, %v231
    %v241 = vmul.f32 %v233, %v232
    %v242 = vadd.f32 %v215, %v234
    %v243 = vadd.f32 %v216, %v235
    %v244 = vadd.f32 %v217, %v236
    %v245 = vadd.f32 %v218, %v237
    %v246 = vadd.f32 %v219, %v238
    %v247 = vadd.f32 %v220, %v239
    %v248 = vadd.f32 %v221, %v240
    %v249 = vadd.f32 %v222, %v241
    %s250 = sld [smem:[#allocation7 + $0x8]]
    %s251 = scalar_lea.vmem %s0, 256
    %v252 = vld [vmem:[%s251] sm:$0xff]
    %v253 = vld [vmem:[%s251 + $0x8] sm:$0xff]
    %v254 = vld [vmem:[%s251 + $0x10] sm:$0xff]
    %v255 = vld [vmem:[%s251 + $0x18] sm:$0x1]
    %v256 = vld [vmem:[%s251 + $0x360] sm:$0xff]
    %v257 = vld [vmem:[%s251 + $0x368] sm:$0xff]
    %v258 = vld [vmem:[%s251 + $0x370] sm:$0xff]
    %v259 = vld [vmem:[%s251 + $0x378] sm:$0x1]
    %v260 = vstv %s250
    %v261 = vmul.f32 %v260, %v252
    %v262 = vmul.f32 %v260, %v253
    %v263 = vmul.f32 %v260, %v254
    %v264 = vmul.f32 %v260, %v255
    %v265 = vmul.f32 %v260, %v256
    %v266 = vmul.f32 %v260, %v257
    %v267 = vmul.f32 %v260, %v258
    %v268 = vmul.f32 %v260, %v259
    %v269 = vadd.f32 %v242, %v261
    %v270 = vadd.f32 %v243, %v262
    %v271 = vadd.f32 %v244, %v263
    %v272 = vadd.f32 %v245, %v264
    %v273 = vadd.f32 %v246, %v265
    %v274 = vadd.f32 %v247, %v266
    %v275 = vadd.f32 %v248, %v267
    %v276 = vadd.f32 %v249, %v268
    %s277 = sld [smem:[#allocation7 + $0x9]]
    %s278 = scalar_lea.vmem %s0, 288
    %v279 = vld [vmem:[%s278] sm:$0xff]
    %v280 = vld [vmem:[%s278 + $0x8] sm:$0xff]
    %v281 = vld [vmem:[%s278 + $0x10] sm:$0xff]
    %v282 = vld [vmem:[%s278 + $0x18] sm:$0x1]
    %v283 = vld [vmem:[%s278 + $0x360] sm:$0xff]
    %v284 = vld [vmem:[%s278 + $0x368] sm:$0xff]
    %v285 = vld [vmem:[%s278 + $0x370] sm:$0xff]
    %v286 = vld [vmem:[%s278 + $0x378] sm:$0x1]
    %v287 = vstv %s277
    %v288 = vmul.f32 %v287, %v279
    %v289 = vmul.f32 %v287, %v280
    %v290 = vmul.f32 %v287, %v281
    %v291 = vmul.f32 %v287, %v282
    %v292 = vmul.f32 %v287, %v283
    %v293 = vmul.f32 %v287, %v284
    %v294 = vmul.f32 %v287, %v285
    %v295 = vmul.f32 %v287, %v286
    %v296 = vadd.f32 %v269, %v288
    %v297 = vadd.f32 %v270, %v289
    %v298 = vadd.f32 %v271, %v290
    %v299 = vadd.f32 %v272, %v291
    %v300 = vadd.f32 %v273, %v292
    %v301 = vadd.f32 %v274, %v293
    %v302 = vadd.f32 %v275, %v294
    %v303 = vadd.f32 %v276, %v295
    %s304 = sld [smem:[#allocation7 + $0xa]]
    %s305 = scalar_lea.vmem %s0, 320
    %v306 = vld [vmem:[%s305] sm:$0xff]
    %v307 = vld [vmem:[%s305 + $0x8] sm:$0xff]
    %v308 = vld [vmem:[%s305 + $0x10] sm:$0xff]
    %v309 = vld [vmem:[%s305 + $0x18] sm:$0x1]
    %v310 = vld [vmem:[%s305 + $0x360] sm:$0xff]
    %v311 = vld [vmem:[%s305 + $0x368] sm:$0xff]
    %v312 = vld [vmem:[%s305 + $0x370] sm:$0xff]
    %v313 = vld [vmem:[%s305 + $0x378] sm:$0x1]
    %v314 = vstv %s304
    %v315 = vmul.f32 %v314, %v306
    %v316 = vmul.f32 %v314, %v307
    %v317 = vmul.f32 %v314, %v308
    %v318 = vmul.f32 %v314, %v309
    %v319 = vmul.f32 %v314, %v310
    %v320 = vmul.f32 %v314, %v311
    %v321 = vmul.f32 %v314, %v312
    %v322 = vmul.f32 %v314, %v313
    %v323 = vadd.f32 %v296, %v315
    %v324 = vadd.f32 %v297, %v316
    %v325 = vadd.f32 %v298, %v317
    %v326 = vadd.f32 %v299, %v318
    %v327 = vadd.f32 %v300, %v319
    %v328 = vadd.f32 %v301, %v320
    %v329 = vadd.f32 %v302, %v321
    %v330 = vadd.f32 %v303, %v322
    %s331 = sld [smem:[#allocation7 + $0xb]]
    %s332 = scalar_lea.vmem %s0, 352
    %v333 = vld [vmem:[%s332] sm:$0xff]
    %v334 = vld [vmem:[%s332 + $0x8] sm:$0xff]
    %v335 = vld [vmem:[%s332 + $0x10] sm:$0xff]
    %v336 = vld [vmem:[%s332 + $0x18] sm:$0x1]
    %v337 = vld [vmem:[%s332 + $0x360] sm:$0xff]
    %v338 = vld [vmem:[%s332 + $0x368] sm:$0xff]
    %v339 = vld [vmem:[%s332 + $0x370] sm:$0xff]
    %v340 = vld [vmem:[%s332 + $0x378] sm:$0x1]
    %v341 = vstv %s331
    %v342 = vmul.f32 %v341, %v333
    %v343 = vmul.f32 %v341, %v334
    %v344 = vmul.f32 %v341, %v335
    %v345 = vmul.f32 %v341, %v336
    %v346 = vmul.f32 %v341, %v337
    %v347 = vmul.f32 %v341, %v338
    %v348 = vmul.f32 %v341, %v339
    %v349 = vmul.f32 %v341, %v340
    %v350 = vadd.f32 %v323, %v342
    %v351 = vadd.f32 %v324, %v343
    %v352 = vadd.f32 %v325, %v344
    %v353 = vadd.f32 %v326, %v345
    %v354 = vadd.f32 %v327, %v346
    %v355 = vadd.f32 %v328, %v347
    %v356 = vadd.f32 %v329, %v348
    %v357 = vadd.f32 %v330, %v349
    %s358 = sld [smem:[#allocation7 + $0xc]]
    %s359 = scalar_lea.vmem %s0, 384
    %v360 = vld [vmem:[%s359] sm:$0xff]
    %v361 = vld [vmem:[%s359 + $0x8] sm:$0xff]
    %v362 = vld [vmem:[%s359 + $0x10] sm:$0xff]
    %v363 = vld [vmem:[%s359 + $0x18] sm:$0x1]
    %v364 = vld [vmem:[%s359 + $0x360] sm:$0xff]
    %v365 = vld [vmem:[%s359 + $0x368] sm:$0xff]
    %v366 = vld [vmem:[%s359 + $0x370] sm:$0xff]
    %v367 = vld [vmem:[%s359 + $0x378] sm:$0x1]
    %v368 = vstv %s358
    %v369 = vmul.f32 %v368, %v360
    %v370 = vmul.f32 %v368, %v361
    %v371 = vmul.f32 %v368, %v362
    %v372 = vmul.f32 %v368, %v363
    %v373 = vmul.f32 %v368, %v364
    %v374 = vmul.f32 %v368, %v365
    %v375 = vmul.f32 %v368, %v366
    %v376 = vmul.f32 %v368, %v367
    %v377 = vadd.f32 %v350, %v369
    %v378 = vadd.f32 %v351, %v370
    %v379 = vadd.f32 %v352, %v371
    %v380 = vadd.f32 %v353, %v372
    %v381 = vadd.f32 %v354, %v373
    %v382 = vadd.f32 %v355, %v374
    %v383 = vadd.f32 %v356, %v375
    %v384 = vadd.f32 %v357, %v376
    %s385 = sld [smem:[#allocation7 + $0xd]]
    %s386 = scalar_lea.vmem %s0, 416
    %v387 = vld [vmem:[%s386] sm:$0xff]
    %v388 = vld [vmem:[%s386 + $0x8] sm:$0xff]
    %v389 = vld [vmem:[%s386 + $0x10] sm:$0xff]
    %v390 = vld [vmem:[%s386 + $0x18] sm:$0x1]
    %v391 = vld [vmem:[%s386 + $0x360] sm:$0xff]
    %v392 = vld [vmem:[%s386 + $0x368] sm:$0xff]
    %v393 = vld [vmem:[%s386 + $0x370] sm:$0xff]
    %v394 = vld [vmem:[%s386 + $0x378] sm:$0x1]
    %v395 = vstv %s385
    %v396 = vmul.f32 %v395, %v387
    %v397 = vmul.f32 %v395, %v388
    %v398 = vmul.f32 %v395, %v389
    %v399 = vmul.f32 %v395, %v390
    %v400 = vmul.f32 %v395, %v391
    %v401 = vmul.f32 %v395, %v392
    %v402 = vmul.f32 %v395, %v393
    %v403 = vmul.f32 %v395, %v394
    %v404 = vadd.f32 %v377, %v396
    %v405 = vadd.f32 %v378, %v397
    %v406 = vadd.f32 %v379, %v398
    %v407 = vadd.f32 %v380, %v399
    %v408 = vadd.f32 %v381, %v400
    %v409 = vadd.f32 %v382, %v401
    %v410 = vadd.f32 %v383, %v402
    %v411 = vadd.f32 %v384, %v403
    %s412 = sld [smem:[#allocation7 + $0xe]]
    %s413 = scalar_lea.vmem %s0, 448
    %v414 = vld [vmem:[%s413] sm:$0xff]
    %v415 = vld [vmem:[%s413 + $0x8] sm:$0xff]
    %v416 = vld [vmem:[%s413 + $0x10] sm:$0xff]
    %v417 = vld [vmem:[%s413 + $0x18] sm:$0x1]
    %v418 = vld [vmem:[%s413 + $0x360] sm:$0xff]
    %v419 = vld [vmem:[%s413 + $0x368] sm:$0xff]
    %v420 = vld [vmem:[%s413 + $0x370] sm:$0xff]
    %v421 = vld [vmem:[%s413 + $0x378] sm:$0x1]
    %v422 = vstv %s412
    %v423 = vmul.f32 %v422, %v414
    %v424 = vmul.f32 %v422, %v415
    %v425 = vmul.f32 %v422, %v416
    %v426 = vmul.f32 %v422, %v417
    %v427 = vmul.f32 %v422, %v418
    %v428 = vmul.f32 %v422, %v419
    %v429 = vmul.f32 %v422, %v420
    %v430 = vmul.f32 %v422, %v421
    %v431 = vadd.f32 %v404, %v423
    %v432 = vadd.f32 %v405, %v424
    %v433 = vadd.f32 %v406, %v425
    %v434 = vadd.f32 %v407, %v426
    %v435 = vadd.f32 %v408, %v427
    %v436 = vadd.f32 %v409, %v428
    %v437 = vadd.f32 %v410, %v429
    %v438 = vadd.f32 %v411, %v430
    %s439 = sld [smem:[#allocation7 + $0xf]]
    %s440 = scalar_lea.vmem %s0, 480
    %v441 = vld [vmem:[%s440] sm:$0xff]
    %v442 = vld [vmem:[%s440 + $0x8] sm:$0xff]
    %v443 = vld [vmem:[%s440 + $0x10] sm:$0xff]
    %v444 = vld [vmem:[%s440 + $0x18] sm:$0x1]
    %v445 = vld [vmem:[%s440 + $0x360] sm:$0xff]
    %v446 = vld [vmem:[%s440 + $0x368] sm:$0xff]
    %v447 = vld [vmem:[%s440 + $0x370] sm:$0xff]
    %v448 = vld [vmem:[%s440 + $0x378] sm:$0x1]
    %v449 = vstv %s439
    %v450 = vmul.f32 %v449, %v441
    %v451 = vmul.f32 %v449, %v442
    %v452 = vmul.f32 %v449, %v443
    %v453 = vmul.f32 %v449, %v444
    %v454 = vmul.f32 %v449, %v445
    %v455 = vmul.f32 %v449, %v446
    %v456 = vmul.f32 %v449, %v447
    %v457 = vmul.f32 %v449, %v448
    %v458 = vadd.f32 %v431, %v450
    %v459 = vadd.f32 %v432, %v451
    %v460 = vadd.f32 %v433, %v452
    %v461 = vadd.f32 %v434, %v453
    %v462 = vadd.f32 %v435, %v454
    %v463 = vadd.f32 %v436, %v455
    %v464 = vadd.f32 %v437, %v456
    %v465 = vadd.f32 %v438, %v457
    %s466 = sld [smem:[#allocation7 + $0x10]]
    %s467 = scalar_lea.vmem %s0, 512
    %v468 = vld [vmem:[%s467] sm:$0xff]
    %v469 = vld [vmem:[%s467 + $0x8] sm:$0xff]
    %v470 = vld [vmem:[%s467 + $0x10] sm:$0xff]
    %v471 = vld [vmem:[%s467 + $0x18] sm:$0x1]
    %v472 = vld [vmem:[%s467 + $0x360] sm:$0xff]
    %v473 = vld [vmem:[%s467 + $0x368] sm:$0xff]
    %v474 = vld [vmem:[%s467 + $0x370] sm:$0xff]
    %v475 = vld [vmem:[%s467 + $0x378] sm:$0x1]
    %v476 = vstv %s466
    %v477 = vmul.f32 %v476, %v468
    %v478 = vmul.f32 %v476, %v469
    %v479 = vmul.f32 %v476, %v470
    %v480 = vmul.f32 %v476, %v471
    %v481 = vmul.f32 %v476, %v472
    %v482 = vmul.f32 %v476, %v473
    %v483 = vmul.f32 %v476, %v474
    %v484 = vmul.f32 %v476, %v475
    %v485 = vadd.f32 %v458, %v477
    %v486 = vadd.f32 %v459, %v478
    %v487 = vadd.f32 %v460, %v479
    %v488 = vadd.f32 %v461, %v480
    %v489 = vadd.f32 %v462, %v481
    %v490 = vadd.f32 %v463, %v482
    %v491 = vadd.f32 %v464, %v483
    %v492 = vadd.f32 %v465, %v484
    %s493 = sld [smem:[#allocation7 + $0x11]]
    %s494 = scalar_lea.vmem %s0, 544
    %v495 = vld [vmem:[%s494] sm:$0xff]
    %v496 = vld [vmem:[%s494 + $0x8] sm:$0xff]
    %v497 = vld [vmem:[%s494 + $0x10] sm:$0xff]
    %v498 = vld [vmem:[%s494 + $0x18] sm:$0x1]
    %v499 = vld [vmem:[%s494 + $0x360] sm:$0xff]
    %v500 = vld [vmem:[%s494 + $0x368] sm:$0xff]
    %v501 = vld [vmem:[%s494 + $0x370] sm:$0xff]
    %v502 = vld [vmem:[%s494 + $0x378] sm:$0x1]
    %v503 = vstv %s493
    %v504 = vmul.f32 %v503, %v495
    %v505 = vmul.f32 %v503, %v496
    %v506 = vmul.f32 %v503, %v497
    %v507 = vmul.f32 %v503, %v498
    %v508 = vmul.f32 %v503, %v499
    %v509 = vmul.f32 %v503, %v500
    %v510 = vmul.f32 %v503, %v501
    %v511 = vmul.f32 %v503, %v502
    %v512 = vadd.f32 %v485, %v504
    %v513 = vadd.f32 %v486, %v505
    %v514 = vadd.f32 %v487, %v506
    %v515 = vadd.f32 %v488, %v507
    %v516 = vadd.f32 %v489, %v508
    %v517 = vadd.f32 %v490, %v509
    %v518 = vadd.f32 %v491, %v510
    %v519 = vadd.f32 %v492, %v511
    %s520 = sld [smem:[#allocation7 + $0x12]]
    %s521 = scalar_lea.vmem %s0, 576
    %v522 = vld [vmem:[%s521] sm:$0xff]
    %v523 = vld [vmem:[%s521 + $0x8] sm:$0xff]
    %v524 = vld [vmem:[%s521 + $0x10] sm:$0xff]
    %v525 = vld [vmem:[%s521 + $0x18] sm:$0x1]
    %v526 = vld [vmem:[%s521 + $0x360] sm:$0xff]
    %v527 = vld [vmem:[%s521 + $0x368] sm:$0xff]
    %v528 = vld [vmem:[%s521 + $0x370] sm:$0xff]
    %v529 = vld [vmem:[%s521 + $0x378] sm:$0x1]
    %v530 = vstv %s520
    %v531 = vmul.f32 %v530, %v522
    %v532 = vmul.f32 %v530, %v523
    %v533 = vmul.f32 %v530, %v524
    %v534 = vmul.f32 %v530, %v525
    %v535 = vmul.f32 %v530, %v526
    %v536 = vmul.f32 %v530, %v527
    %v537 = vmul.f32 %v530, %v528
    %v538 = vmul.f32 %v530, %v529
    %v539 = vadd.f32 %v512, %v531
    %v540 = vadd.f32 %v513, %v532
    %v541 = vadd.f32 %v514, %v533
    %v542 = vadd.f32 %v515, %v534
    %v543 = vadd.f32 %v516, %v535
    %v544 = vadd.f32 %v517, %v536
    %v545 = vadd.f32 %v518, %v537
    %v546 = vadd.f32 %v519, %v538
    %s547 = sld [smem:[#allocation7 + $0x13]]
    %s548 = scalar_lea.vmem %s0, 608
    %v549 = vld [vmem:[%s548] sm:$0xff]
    %v550 = vld [vmem:[%s548 + $0x8] sm:$0xff]
    %v551 = vld [vmem:[%s548 + $0x10] sm:$0xff]
    %v552 = vld [vmem:[%s548 + $0x18] sm:$0x1]
    %v553 = vld [vmem:[%s548 + $0x360] sm:$0xff]
    %v554 = vld [vmem:[%s548 + $0x368] sm:$0xff]
    %v555 = vld [vmem:[%s548 + $0x370] sm:$0xff]
    %v556 = vld [vmem:[%s548 + $0x378] sm:$0x1]
    %v557 = vstv %s547
    %v558 = vmul.f32 %v557, %v549
    %v559 = vmul.f32 %v557, %v550
    %v560 = vmul.f32 %v557, %v551
    %v561 = vmul.f32 %v557, %v552
    %v562 = vmul.f32 %v557, %v553
    %v563 = vmul.f32 %v557, %v554
    %v564 = vmul.f32 %v557, %v555
    %v565 = vmul.f32 %v557, %v556
    %v566 = vadd.f32 %v539, %v558
    %v567 = vadd.f32 %v540, %v559
    %v568 = vadd.f32 %v541, %v560
    %v569 = vadd.f32 %v542, %v561
    %v570 = vadd.f32 %v543, %v562
    %v571 = vadd.f32 %v544, %v563
    %v572 = vadd.f32 %v545, %v564
    %v573 = vadd.f32 %v546, %v565
    %s574 = sld [smem:[#allocation7 + $0x14]]
    %s575 = scalar_lea.vmem %s0, 640
    %v576 = vld [vmem:[%s575] sm:$0xff]
    %v577 = vld [vmem:[%s575 + $0x8] sm:$0xff]
    %v578 = vld [vmem:[%s575 + $0x10] sm:$0xff]
    %v579 = vld [vmem:[%s575 + $0x18] sm:$0x1]
    %v580 = vld [vmem:[%s575 + $0x360] sm:$0xff]
    %v581 = vld [vmem:[%s575 + $0x368] sm:$0xff]
    %v582 = vld [vmem:[%s575 + $0x370] sm:$0xff]
    %v583 = vld [vmem:[%s575 + $0x378] sm:$0x1]
    %v584 = vstv %s574
    %v585 = vmul.f32 %v584, %v576
    %v586 = vmul.f32 %v584, %v577
    %v587 = vmul.f32 %v584, %v578
    %v588 = vmul.f32 %v584, %v579
    %v589 = vmul.f32 %v584, %v580
    %v590 = vmul.f32 %v584, %v581
    %v591 = vmul.f32 %v584, %v582
    %v592 = vmul.f32 %v584, %v583
    %v593 = vadd.f32 %v566, %v585
    %v594 = vadd.f32 %v567, %v586
    %v595 = vadd.f32 %v568, %v587
    %v596 = vadd.f32 %v569, %v588
    %v597 = vadd.f32 %v570, %v589
    %v598 = vadd.f32 %v571, %v590
    %v599 = vadd.f32 %v572, %v591
    %v600 = vadd.f32 %v573, %v592
    %s601 = sld [smem:[#allocation7 + $0x15]]
    %s602 = scalar_lea.vmem %s0, 672
    %v603 = vld [vmem:[%s602] sm:$0xff]
    %v604 = vld [vmem:[%s602 + $0x8] sm:$0xff]
    %v605 = vld [vmem:[%s602 + $0x10] sm:$0xff]
    %v606 = vld [vmem:[%s602 + $0x18] sm:$0x1]
    %v607 = vld [vmem:[%s602 + $0x360] sm:$0xff]
    %v608 = vld [vmem:[%s602 + $0x368] sm:$0xff]
    %v609 = vld [vmem:[%s602 + $0x370] sm:$0xff]
    %v610 = vld [vmem:[%s602 + $0x378] sm:$0x1]
    %v611 = vstv %s601
    %v612 = vmul.f32 %v611, %v603
    %v613 = vmul.f32 %v611, %v604
    %v614 = vmul.f32 %v611, %v605
    %v615 = vmul.f32 %v611, %v606
    %v616 = vmul.f32 %v611, %v607
    %v617 = vmul.f32 %v611, %v608
    %v618 = vmul.f32 %v611, %v609
    %v619 = vmul.f32 %v611, %v610
    %v620 = vadd.f32 %v593, %v612
    %v621 = vadd.f32 %v594, %v613
    %v622 = vadd.f32 %v595, %v614
    %v623 = vadd.f32 %v596, %v615
    %v624 = vadd.f32 %v597, %v616
    %v625 = vadd.f32 %v598, %v617
    %v626 = vadd.f32 %v599, %v618
    %v627 = vadd.f32 %v600, %v619
    %s628 = sld [smem:[#allocation7 + $0x16]]
    %s629 = scalar_lea.vmem %s0, 704
    %v630 = vld [vmem:[%s629] sm:$0xff]
    %v631 = vld [vmem:[%s629 + $0x8] sm:$0xff]
    %v632 = vld [vmem:[%s629 + $0x10] sm:$0xff]
    %v633 = vld [vmem:[%s629 + $0x18] sm:$0x1]
    %v634 = vld [vmem:[%s629 + $0x360] sm:$0xff]
    %v635 = vld [vmem:[%s629 + $0x368] sm:$0xff]
    %v636 = vld [vmem:[%s629 + $0x370] sm:$0xff]
    %v637 = vld [vmem:[%s629 + $0x378] sm:$0x1]
    %v638 = vstv %s628
    %v639 = vmul.f32 %v638, %v630
    %v640 = vmul.f32 %v638, %v631
    %v641 = vmul.f32 %v638, %v632
    %v642 = vmul.f32 %v638, %v633
    %v643 = vmul.f32 %v638, %v634
    %v644 = vmul.f32 %v638, %v635
    %v645 = vmul.f32 %v638, %v636
    %v646 = vmul.f32 %v638, %v637
    %v647 = vadd.f32 %v620, %v639
    %v648 = vadd.f32 %v621, %v640
    %v649 = vadd.f32 %v622, %v641
    %v650 = vadd.f32 %v623, %v642
    %v651 = vadd.f32 %v624, %v643
    %v652 = vadd.f32 %v625, %v644
    %v653 = vadd.f32 %v626, %v645
    %v654 = vadd.f32 %v627, %v646
    %s655 = sld [smem:[#allocation7 + $0x17]]
    %s656 = scalar_lea.vmem %s0, 736
    %v657 = vld [vmem:[%s656] sm:$0xff]
    %v658 = vld [vmem:[%s656 + $0x8] sm:$0xff]
    %v659 = vld [vmem:[%s656 + $0x10] sm:$0xff]
    %v660 = vld [vmem:[%s656 + $0x18] sm:$0x1]
    %v661 = vld [vmem:[%s656 + $0x360] sm:$0xff]
    %v662 = vld [vmem:[%s656 + $0x368] sm:$0xff]
    %v663 = vld [vmem:[%s656 + $0x370] sm:$0xff]
    %v664 = vld [vmem:[%s656 + $0x378] sm:$0x1]
    %v665 = vstv %s655
    %v666 = vmul.f32 %v665, %v657
    %v667 = vmul.f32 %v665, %v658
    %v668 = vmul.f32 %v665, %v659
    %v669 = vmul.f32 %v665, %v660
    %v670 = vmul.f32 %v665, %v661
    %v671 = vmul.f32 %v665, %v662
    %v672 = vmul.f32 %v665, %v663
    %v673 = vmul.f32 %v665, %v664
    %v674 = vadd.f32 %v647, %v666
    %v675 = vadd.f32 %v648, %v667
    %v676 = vadd.f32 %v649, %v668
    %v677 = vadd.f32 %v650, %v669
    %v678 = vadd.f32 %v651, %v670
    %v679 = vadd.f32 %v652, %v671
    %v680 = vadd.f32 %v653, %v672
    %v681 = vadd.f32 %v654, %v673
    %s682 = sld [smem:[#allocation7 + $0x18]]
    %s683 = scalar_lea.vmem %s0, 768
    %v684 = vld [vmem:[%s683] sm:$0xff]
    %v685 = vld [vmem:[%s683 + $0x8] sm:$0xff]
    %v686 = vld [vmem:[%s683 + $0x10] sm:$0xff]
    %v687 = vld [vmem:[%s683 + $0x18] sm:$0x1]
    %v688 = vld [vmem:[%s683 + $0x360] sm:$0xff]
    %v689 = vld [vmem:[%s683 + $0x368] sm:$0xff]
    %v690 = vld [vmem:[%s683 + $0x370] sm:$0xff]
    %v691 = vld [vmem:[%s683 + $0x378] sm:$0x1]
    %v692 = vstv %s682
    %v693 = vmul.f32 %v692, %v684
    %v694 = vmul.f32 %v692, %v685
    %v695 = vmul.f32 %v692, %v686
    %v696 = vmul.f32 %v692, %v687
    %v697 = vmul.f32 %v692, %v688
    %v698 = vmul.f32 %v692, %v689
    %v699 = vmul.f32 %v692, %v690
    %v700 = vmul.f32 %v692, %v691
    %v701 = vadd.f32 %v674, %v693
    %v702 = vadd.f32 %v675, %v694
    %v703 = vadd.f32 %v676, %v695
    %v704 = vadd.f32 %v677, %v696
    %v705 = vadd.f32 %v678, %v697
    %v706 = vadd.f32 %v679, %v698
    %v707 = vadd.f32 %v680, %v699
    %v708 = vadd.f32 %v681, %v700
    %s709 = sld [smem:[#allocation7 + $0x19]]
    %s710 = scalar_lea.vmem %s0, 800
    %v711 = vld [vmem:[%s710] sm:$0xff]
    %v712 = vld [vmem:[%s710 + $0x8] sm:$0xff]
    %v713 = vld [vmem:[%s710 + $0x10] sm:$0xff]
    %v714 = vld [vmem:[%s710 + $0x18] sm:$0x1]
    %v715 = vld [vmem:[%s710 + $0x360] sm:$0xff]
    %v716 = vld [vmem:[%s710 + $0x368] sm:$0xff]
    %v717 = vld [vmem:[%s710 + $0x370] sm:$0xff]
    %v718 = vld [vmem:[%s710 + $0x378] sm:$0x1]
    %v719 = vstv %s709
    %v720 = vmul.f32 %v719, %v711
    %v721 = vmul.f32 %v719, %v712
    %v722 = vmul.f32 %v719, %v713
    %v723 = vmul.f32 %v719, %v714
    %v724 = vmul.f32 %v719, %v715
    %v725 = vmul.f32 %v719, %v716
    %v726 = vmul.f32 %v719, %v717
    %v727 = vmul.f32 %v719, %v718
    %v728 = vadd.f32 %v701, %v720
    %v729 = vadd.f32 %v702, %v721
    %v730 = vadd.f32 %v703, %v722
    %v731 = vadd.f32 %v704, %v723
    %v732 = vadd.f32 %v705, %v724
    %v733 = vadd.f32 %v706, %v725
    %v734 = vadd.f32 %v707, %v726
    %v735 = vadd.f32 %v708, %v727
    %s736 = sld [smem:[#allocation7 + $0x1a]]
    %s737 = scalar_lea.vmem %s0, 832
    %v738 = vld [vmem:[%s737] sm:$0xff]
    %v739 = vld [vmem:[%s737 + $0x8] sm:$0xff]
    %v740 = vld [vmem:[%s737 + $0x10] sm:$0xff]
    %v741 = vld [vmem:[%s737 + $0x18] sm:$0x1]
    %v742 = vld [vmem:[%s737 + $0x360] sm:$0xff]
    %v743 = vld [vmem:[%s737 + $0x368] sm:$0xff]
    %v744 = vld [vmem:[%s737 + $0x370] sm:$0xff]
    %v745 = vld [vmem:[%s737 + $0x378] sm:$0x1]
    %v746 = vstv %s736
    %v747 = vmul.f32 %v746, %v738
    %v748 = vmul.f32 %v746, %v739
    %v749 = vmul.f32 %v746, %v740
    %v750 = vmul.f32 %v746, %v741
    %v751 = vmul.f32 %v746, %v742
    %v752 = vmul.f32 %v746, %v743
    %v753 = vmul.f32 %v746, %v744
    %v754 = vmul.f32 %v746, %v745
    %v755 = vadd.f32 %v728, %v747
    %v756 = vadd.f32 %v729, %v748
    %v757 = vadd.f32 %v730, %v749
    %v758 = vadd.f32 %v731, %v750
    %v759 = vadd.f32 %v732, %v751
    %v760 = vadd.f32 %v733, %v752
    %v761 = vadd.f32 %v734, %v753
    %v762 = vadd.f32 %v735, %v754
    %vm763 = vcmask 202752
    %v764 = vsel %vm763, %v755, -inf
    %v765 = vrot.slane %v764, 4
    %v766 = vmax.f32 %v764, %v765
    %v767 = vrot.slane %v766, 2
    %v768 = vmax.f32 %v766, %v767
    %v769 = vrot.slane %v768, 1
    %v770 = vmax.f32 %v768, %v769
    %v771 = vsel %vm763, %v759, -inf
    %v772 = vrot.slane %v771, 4
    %v773 = vmax.f32 %v771, %v772
    %v774 = vrot.slane %v773, 2
    %v775 = vmax.f32 %v773, %v774
    %v776 = vrot.slane %v775, 1
    %v777 = vmax.f32 %v775, %v776
    %vm778 = vcmask 196608
    %779 = vst.msk [vmem:[#allocation2] sm:$0x1] %vm778, %v770
    %780 = vst.msk [vmem:[#allocation2 + $0x10] sm:$0x1] %vm778, %v777
    %vm781 = vcmask 203778
    %v782 = vsel %vm781, %v755, -inf
    %v783 = vsel %vm778, %v756, -inf
    %v784 = vmax.f32 %v782, %v783
    %v785 = vrot.slane %v784, 4
    %v786 = vmax.f32 %v784, %v785
    %v787 = vrot.slane %v786, 2
    %v788 = vmax.f32 %v786, %v787
    %v789 = vrot.slane %v788, 1
    %v790 = vmax.f32 %v788, %v789
    %v791 = vsel %vm781, %v759, -inf
    %v792 = vsel %vm778, %v760, -inf
    %v793 = vmax.f32 %v791, %v792
    %v794 = vrot.slane %v793, 4
    %v795 = vmax.f32 %v793, %v794
    %v796 = vrot.slane %v795, 2
    %v797 = vmax.f32 %v795, %v796
    %v798 = vrot.slane %v797, 1
    %v799 = vmax.f32 %v797, %v798
    %800 = vst.msk [vmem:[#allocation2 + $0x1] sm:$0x1] %vm778, %v790
    %801 = vst.msk [vmem:[#allocation2 + $0x11] sm:$0x1] %vm778, %v799
    %vm802 = vcmask 203780
    %v803 = vsel %vm802, %v755, -inf
    %vm804 = vcmask 198656
    %v805 = vsel %vm804, %v756, -inf
    %v806 = vmax.f32 %v803, %v805
    %v807 = vrot.slane %v806, 4
    %v808 = vmax.f32 %v806, %v807
    %v809 = vrot.slane %v808, 2
    %v810 = vmax.f32 %v808, %v809
    %v811 = vrot.slane %v810, 1
    %v812 = vmax.f32 %v810, %v811
    %v813 = vsel %vm802, %v759, -inf
    %v814 = vsel %vm804, %v760, -inf
    %v815 = vmax.f32 %v813, %v814
    %v816 = vrot.slane %v815, 4
    %v817 = vmax.f32 %v815, %v816
    %v818 = vrot.slane %v817, 2
    %v819 = vmax.f32 %v817, %v818
    %v820 = vrot.slane %v819, 1
    %v821 = vmax.f32 %v819, %v820
    %822 = vst.msk [vmem:[#allocation2 + $0x2] sm:$0x1] %vm778, %v812
    %823 = vst.msk [vmem:[#allocation2 + $0x12] sm:$0x1] %vm778, %v821
    %vm824 = vcmask 203782
    %v825 = vsel %vm824, %v755, -inf
    %vm826 = vcmask 200704
    %v827 = vsel %vm826, %v756, -inf
    %v828 = vmax.f32 %v825, %v827
    %v829 = vrot.slane %v828, 4
    %v830 = vmax.f32 %v828, %v829
    %v831 = vrot.slane %v830, 2
    %v832 = vmax.f32 %v830, %v831
    %v833 = vrot.slane %v832, 1
    %v834 = vmax.f32 %v832, %v833
    %v835 = vsel %vm824, %v759, -inf
    %v836 = vsel %vm826, %v760, -inf
    %v837 = vmax.f32 %v835, %v836
    %v838 = vrot.slane %v837, 4
    %v839 = vmax.f32 %v837, %v838
    %v840 = vrot.slane %v839, 2
    %v841 = vmax.f32 %v839, %v840
    %v842 = vrot.slane %v841, 1
    %v843 = vmax.f32 %v841, %v842
    %844 = vst.msk [vmem:[#allocation2 + $0x3] sm:$0x1] %vm778, %v834
    %845 = vst.msk [vmem:[#allocation2 + $0x13] sm:$0x1] %vm778, %v843
    %v846 = vsel %vm763, %v756, -inf
    %v847 = vrot.slane %v846, 4
    %v848 = vmax.f32 %v846, %v847
    %v849 = vrot.slane %v848, 2
    %v850 = vmax.f32 %v848, %v849
    %v851 = vrot.slane %v850, 1
    %v852 = vmax.f32 %v850, %v851
    %v853 = vsel %vm763, %v760, -inf
    %v854 = vrot.slane %v853, 4
    %v855 = vmax.f32 %v853, %v854
    %v856 = vrot.slane %v855, 2
    %v857 = vmax.f32 %v855, %v856
    %v858 = vrot.slane %v857, 1
    %v859 = vmax.f32 %v857, %v858
    %860 = vst.msk [vmem:[#allocation2 + $0x4] sm:$0x1] %vm778, %v852
    %861 = vst.msk [vmem:[#allocation2 + $0x14] sm:$0x1] %vm778, %v859
    %v862 = vsel %vm781, %v756, -inf
    %v863 = vsel %vm778, %v757, -inf
    %v864 = vmax.f32 %v862, %v863
    %v865 = vrot.slane %v864, 4
    %v866 = vmax.f32 %v864, %v865
    %v867 = vrot.slane %v866, 2
    %v868 = vmax.f32 %v866, %v867
    %v869 = vrot.slane %v868, 1
    %v870 = vmax.f32 %v868, %v869
    %v871 = vsel %vm781, %v760, -inf
    %v872 = vsel %vm778, %v761, -inf
    %v873 = vmax.f32 %v871, %v872
    %v874 = vrot.slane %v873, 4
    %v875 = vmax.f32 %v873, %v874
    %v876 = vrot.slane %v875, 2
    %v877 = vmax.f32 %v875, %v876
    %v878 = vrot.slane %v877, 1
    %v879 = vmax.f32 %v877, %v878
    %880 = vst.msk [vmem:[#allocation2 + $0x5] sm:$0x1] %vm778, %v870
    %881 = vst.msk [vmem:[#allocation2 + $0x15] sm:$0x1] %vm778, %v879
    %v882 = vsel %vm802, %v756, -inf
    %v883 = vsel %vm804, %v757, -inf
    %v884 = vmax.f32 %v882, %v883
    %v885 = vrot.slane %v884, 4
    %v886 = vmax.f32 %v884, %v885
    %v887 = vrot.slane %v886, 2
    %v888 = vmax.f32 %v886, %v887
    %v889 = vrot.slane %v888, 1
    %v890 = vmax.f32 %v888, %v889
    %v891 = vsel %vm802, %v760, -inf
    %v892 = vsel %vm804, %v761, -inf
    %v893 = vmax.f32 %v891, %v892
    %v894 = vrot.slane %v893, 4
    %v895 = vmax.f32 %v893, %v894
    %v896 = vrot.slane %v895, 2
    %v897 = vmax.f32 %v895, %v896
    %v898 = vrot.slane %v897, 1
    %v899 = vmax.f32 %v897, %v898
    %900 = vst.msk [vmem:[#allocation2 + $0x6] sm:$0x1] %vm778, %v890
    %901 = vst.msk [vmem:[#allocation2 + $0x16] sm:$0x1] %vm778, %v899
    %v902 = vsel %vm824, %v756, -inf
    %v903 = vsel %vm826, %v757, -inf
    %v904 = vmax.f32 %v902, %v903
    %v905 = vrot.slane %v904, 4
    %v906 = vmax.f32 %v904, %v905
    %v907 = vrot.slane %v906, 2
    %v908 = vmax.f32 %v906, %v907
    %v909 = vrot.slane %v908, 1
    %v910 = vmax.f32 %v908, %v909
    %v911 = vsel %vm824, %v760, -inf
    %v912 = vsel %vm826, %v761, -inf
    %v913 = vmax.f32 %v911, %v912
    %v914 = vrot.slane %v913, 4
    %v915 = vmax.f32 %v913, %v914
    %v916 = vrot.slane %v915, 2
    %v917 = vmax.f32 %v915, %v916
    %v918 = vrot.slane %v917, 1
    %v919 = vmax.f32 %v917, %v918
    %920 = vst.msk [vmem:[#allocation2 + $0x7] sm:$0x1] %vm778, %v910
    %921 = vst.msk [vmem:[#allocation2 + $0x17] sm:$0x1] %vm778, %v919
    %v922 = vsel %vm763, %v757, -inf
    %v923 = vrot.slane %v922, 4
    %v924 = vmax.f32 %v922, %v923
    %v925 = vrot.slane %v924, 2
    %v926 = vmax.f32 %v924, %v925
    %v927 = vrot.slane %v926, 1
    %v928 = vmax.f32 %v926, %v927
    %v929 = vsel %vm763, %v761, -inf
    %v930 = vrot.slane %v929, 4
    %v931 = vmax.f32 %v929, %v930
    %v932 = vrot.slane %v931, 2
    %v933 = vmax.f32 %v931, %v932
    %v934 = vrot.slane %v933, 1
    %v935 = vmax.f32 %v933, %v934
    %936 = vst.msk [vmem:[#allocation2 + $0x8] sm:$0x1] %vm778, %v928
    %937 = vst.msk [vmem:[#allocation2 + $0x18] sm:$0x1] %vm778, %v935
    %v938 = vsel %vm781, %v757, -inf
    %v939 = vsel %vm778, %v758, -inf
    %v940 = vmax.f32 %v938, %v939
    %v941 = vrot.slane %v940, 4
    %v942 = vmax.f32 %v940, %v941
    %v943 = vrot.slane %v942, 2
    %v944 = vmax.f32 %v942, %v943
    %v945 = vrot.slane %v944, 1
    %v946 = vmax.f32 %v944, %v945
    %v947 = vsel %vm781, %v761, -inf
    %v948 = vsel %vm778, %v762, -inf
    %v949 = vmax.f32 %v947, %v948
    %v950 = vrot.slane %v949, 4
    %v951 = vmax.f32 %v949, %v950
    %v952 = vrot.slane %v951, 2
    %v953 = vmax.f32 %v951, %v952
    %v954 = vrot.slane %v953, 1
    %v955 = vmax.f32 %v953, %v954
    %956 = vst.msk [vmem:[#allocation2 + $0x9] sm:$0x1] %vm778, %v946
    %957 = vst.msk [vmem:[#allocation2 + $0x19] sm:$0x1] %vm778, %v955
    %v958 = vld [vmem:[#allocation2] sm:$0xff]
    %v959 = vld [vmem:[#allocation2 + $0x8] sm:$0x3]
    %v960 = vld [vmem:[#allocation2 + $0x10] sm:$0xff]
    %v961 = vld [vmem:[#allocation2 + $0x18] sm:$0x3]
    %vm962 = vcmask 56320
    %v963 = vsel %vm962, %v958, -inf
    %964 = vmax.xlane.f32.xlu0 %v963
    %v965 = vpop.xlane.xlu0 %964
    %vm966 = vcmask 50176
    %v967 = vsel %vm966, %v959, -inf
    %968 = vmax.xlane.f32.xlu0 %v967
    %v969 = vpop.xlane.xlu0 %968
    %v970 = vsel %vm962, %v960, -inf
    %971 = vmax.xlane.f32.xlu0 %v970
    %v972 = vpop.xlane.xlu0 %971
    %v973 = vsel %vm966, %v961, -inf
    %974 = vmax.xlane.f32.xlu0 %v973
    %v975 = vpop.xlane.xlu0 %974
    %vm976 = vcmask 7168
    %977 = vst.msk [vmem:[#allocation3] sm:$0xff] %vm976, %v965
    %vm978 = vcmask 1024
    %979 = vst.msk [vmem:[#allocation3 + $0x8] sm:$0x3] %vm978, %v969
    %980 = vst.msk [vmem:[#allocation3 + $0x10] sm:$0xff] %vm976, %v972
    %981 = vst.msk [vmem:[#allocation3 + $0x18] sm:$0x3] %vm978, %v975
    %vm982 = vcmask 72720
    %v983 = vsel %vm982, %v958, -inf
    %984 = vmax.xlane.f32.xlu0 %v983
    %v985 = vpop.xlane.xlu0 %984
    %vm986 = vcmask 66576
    %v987 = vsel %vm986, %v959, -inf
    %988 = vmax.xlane.f32.xlu0 %v987
    %v989 = vpop.xlane.xlu0 %988
    %v990 = vsel %vm982, %v960, -inf
    %991 = vmax.xlane.f32.xlu0 %v990
    %v992 = vpop.xlane.xlu0 %991
    %v993 = vsel %vm986, %v961, -inf
    %994 = vmax.xlane.f32.xlu0 %v993
    %v995 = vpop.xlane.xlu0 %994
    %vm996 = vcmask 15368
    %997 = vst.msk [vmem:[#allocation3] sm:$0xff] %vm996, %v985
    %vm998 = vcmask 9224
    %999 = vst.msk [vmem:[#allocation3 + $0x8] sm:$0x3] %vm998, %v989
    %1000 = vst.msk [vmem:[#allocation3 + $0x10] sm:$0xff] %vm996, %v992
    %1001 = vst.msk [vmem:[#allocation3 + $0x18] sm:$0x3] %vm998, %v995
    %vm1002 = vcmask 89120
    %v1003 = vsel %vm1002, %v958, -inf
    %1004 = vmax.xlane.f32.xlu0 %v1003
    %v1005 = vpop.xlane.xlu0 %1004
    %vm1006 = vcmask 82976
    %v1007 = vsel %vm1006, %v959, -inf
    %1008 = vmax.xlane.f32.xlu0 %v1007
    %v1009 = vpop.xlane.xlu0 %1008
    %v1010 = vsel %vm1002, %v960, -inf
    %1011 = vmax.xlane.f32.xlu0 %v1010
    %v1012 = vpop.xlane.xlu0 %1011
    %v1013 = vsel %vm1006, %v961, -inf
    %1014 = vmax.xlane.f32.xlu0 %v1013
    %v1015 = vpop.xlane.xlu0 %1014
    %vm1016 = vcmask 23568
    %1017 = vst.msk [vmem:[#allocation3] sm:$0xff] %vm1016, %v1005
    %vm1018 = vcmask 17424
    %1019 = vst.msk [vmem:[#allocation3 + $0x8] sm:$0x3] %vm1018, %v1009
    %1020 = vst.msk [vmem:[#allocation3 + $0x10] sm:$0xff] %vm1016, %v1012
    %1021 = vst.msk [vmem:[#allocation3 + $0x18] sm:$0x3] %vm1018, %v1015
    %vm1022 = vcmask 105520
    %v1023 = vsel %vm1022, %v958, -inf
    %1024 = vmax.xlane.f32.xlu0 %v1023
    %v1025 = vpop.xlane.xlu0 %1024
    %vm1026 = vcmask 99376
    %v1027 = vsel %vm1026, %v959, -inf
    %1028 = vmax.xlane.f32.xlu0 %v1027
    %v1029 = vpop.xlane.xlu0 %1028
    %v1030 = vsel %vm1022, %v960, -inf
    %1031 = vmax.xlane.f32.xlu0 %v1030
    %v1032 = vpop.xlane.xlu0 %1031
    %v1033 = vsel %vm1026, %v961, -inf
    %1034 = vmax.xlane.f32.xlu0 %v1033
    %v1035 = vpop.xlane.xlu0 %1034
    %vm1036 = vcmask 31768
    %1037 = vst.msk [vmem:[#allocation3] sm:$0xff] %vm1036, %v1025
    %vm1038 = vcmask 25624
    %1039 = vst.msk [vmem:[#allocation3 + $0x8] sm:$0x3] %vm1038, %v1029
    %1040 = vst.msk [vmem:[#allocation3 + $0x10] sm:$0xff] %vm1036, %v1032
    %1041 = vst.msk [vmem:[#allocation3 + $0x18] sm:$0x3] %vm1038, %v1035
    %vm1042 = vcmask 121920
    %v1043 = vsel %vm1042, %v958, -inf
    %1044 = vmax.xlane.f32.xlu0 %v1043
    %v1045 = vpop.xlane.xlu0 %1044
    %vm1046 = vcmask 115776
    %v1047 = vsel %vm1046, %v959, -inf
    %1048 = vmax.xlane.f32.xlu0 %v1047
    %v1049 = vpop.xlane.xlu0 %1048
    %v1050 = vsel %vm1042, %v960, -inf
    %1051 = vmax.xlane.f32.xlu0 %v1050
    %v1052 = vpop.xlane.xlu0 %1051
    %v1053 = vsel %vm1046, %v961, -inf
    %1054 = vmax.xlane.f32.xlu0 %v1053
    %v1055 = vpop.xlane.xlu0 %1054
    %vm1056 = vcmask 39968
    %1057 = vst.msk [vmem:[#allocation3] sm:$0xff] %vm1056, %v1045
    %vm1058 = vcmask 33824
    %1059 = vst.msk [vmem:[#allocation3 + $0x8] sm:$0x3] %vm1058, %v1049
    %1060 = vst.msk [vmem:[#allocation3 + $0x10] sm:$0xff] %vm1056, %v1052
    %1061 = vst.msk [vmem:[#allocation3 + $0x18] sm:$0x3] %vm1058, %v1055
    %vm1062 = vcmask 138320
    %v1063 = vsel %vm1062, %v958, -inf
    %1064 = vmax.xlane.f32.xlu0 %v1063
    %v1065 = vpop.xlane.xlu0 %1064
    %vm1066 = vcmask 132176
    %v1067 = vsel %vm1066, %v959, -inf
    %1068 = vmax.xlane.f32.xlu0 %v1067
    %v1069 = vpop.xlane.xlu0 %1068
    %v1070 = vsel %vm1062, %v960, -inf
    %1071 = vmax.xlane.f32.xlu0 %v1070
    %v1072 = vpop.xlane.xlu0 %1071
    %v1073 = vsel %vm1066, %v961, -inf
    %1074 = vmax.xlane.f32.xlu0 %v1073
    %v1075 = vpop.xlane.xlu0 %1074
    %vm1076 = vcmask 48168
    %1077 = vst.msk [vmem:[#allocation3] sm:$0xff] %vm1076, %v1065
    %vm1078 = vcmask 42024
    %1079 = vst.msk [vmem:[#allocation3 + $0x8] sm:$0x3] %vm1078, %v1069
    %1080 = vst.msk [vmem:[#allocation3 + $0x10] sm:$0xff] %vm1076, %v1072
    %1081 = vst.msk [vmem:[#allocation3 + $0x18] sm:$0x3] %vm1078, %v1075
    %vm1082 = vcmask 154720
    %v1083 = vsel %vm1082, %v958, -inf
    %1084 = vmax.xlane.f32.xlu0 %v1083
    %v1085 = vpop.xlane.xlu0 %1084
    %vm1086 = vcmask 148576
    %v1087 = vsel %vm1086, %v959, -inf
    %1088 = vmax.xlane.f32.xlu0 %v1087
    %v1089 = vpop.xlane.xlu0 %1088
    %v1090 = vsel %vm1082, %v960, -inf
    %1091 = vmax.xlane.f32.xlu0 %v1090
    %v1092 = vpop.xlane.xlu0 %1091
    %v1093 = vsel %vm1086, %v961, -inf
    %1094 = vmax.xlane.f32.xlu0 %v1093
    %v1095 = vpop.xlane.xlu0 %1094
    %vm1096 = vcmask 56368
    %1097 = vst.msk [vmem:[#allocation3] sm:$0xff] %vm1096, %v1085
    %vm1098 = vcmask 50224
    %1099 = vst.msk [vmem:[#allocation3 + $0x8] sm:$0x3] %vm1098, %v1089
    %1100 = vst.msk [vmem:[#allocation3 + $0x10] sm:$0xff] %vm1096, %v1092
    %1101 = vst.msk [vmem:[#allocation3 + $0x18] sm:$0x3] %vm1098, %v1095
    %vm1102 = vcmask 171120
    %v1103 = vsel %vm1102, %v958, -inf
    %1104 = vmax.xlane.f32.xlu0 %v1103
    %v1105 = vpop.xlane.xlu0 %1104
    %vm1106 = vcmask 164976
    %v1107 = vsel %vm1106, %v959, -inf
    %1108 = vmax.xlane.f32.xlu0 %v1107
    %v1109 = vpop.xlane.xlu0 %1108
    %v1110 = vsel %vm1102, %v960, -inf
    %1111 = vmax.xlane.f32.xlu0 %v1110
    %v1112 = vpop.xlane.xlu0 %1111
    %v1113 = vsel %vm1106, %v961, -inf
    %1114 = vmax.xlane.f32.xlu0 %v1113
    %v1115 = vpop.xlane.xlu0 %1114
    %vm1116 = vcmask 64568
    %1117 = vst.msk [vmem:[#allocation3] sm:$0xff] %vm1116, %v1105
    %vm1118 = vcmask 58424
    %1119 = vst.msk [vmem:[#allocation3 + $0x8] sm:$0x3] %vm1118, %v1109
    %1120 = vst.msk [vmem:[#allocation3 + $0x10] sm:$0xff] %vm1116, %v1112
    %1121 = vst.msk [vmem:[#allocation3 + $0x18] sm:$0x3] %vm1118, %v1115
    %vm1122 = vcmask 187520
    %v1123 = vsel %vm1122, %v958, -inf
    %1124 = vmax.xlane.f32.xlu0 %v1123
    %v1125 = vpop.xlane.xlu0 %1124
    %vm1126 = vcmask 181376
    %v1127 = vsel %vm1126, %v959, -inf
    %1128 = vmax.xlane.f32.xlu0 %v1127
    %v1129 = vpop.xlane.xlu0 %1128
    %v1130 = vsel %vm1122, %v960, -inf
    %1131 = vmax.xlane.f32.xlu0 %v1130
    %v1132 = vpop.xlane.xlu0 %1131
    %v1133 = vsel %vm1126, %v961, -inf
    %1134 = vmax.xlane.f32.xlu0 %v1133
    %v1135 = vpop.xlane.xlu0 %1134
    %vm1136 = vcmask 72768
    %1137 = vst.msk [vmem:[#allocation3] sm:$0xff] %vm1136, %v1125
    %vm1138 = vcmask 66624
    %1139 = vst.msk [vmem:[#allocation3 + $0x8] sm:$0x3] %vm1138, %v1129
    %1140 = vst.msk [vmem:[#allocation3 + $0x10] sm:$0xff] %vm1136, %v1132
    %1141 = vst.msk [vmem:[#allocation3 + $0x18] sm:$0x3] %vm1138, %v1135
    %vm1142 = vcmask 203920
    %v1143 = vsel %vm1142, %v958, -inf
    %1144 = vmax.xlane.f32.xlu0 %v1143
    %v1145 = vpop.xlane.xlu0 %1144
    %vm1146 = vcmask 197776
    %v1147 = vsel %vm1146, %v959, -inf
    %1148 = vmax.xlane.f32.xlu0 %v1147
    %v1149 = vpop.xlane.xlu0 %1148
    %v1150 = vsel %vm1142, %v960, -inf
    %1151 = vmax.xlane.f32.xlu0 %v1150
    %v1152 = vpop.xlane.xlu0 %1151
    %v1153 = vsel %vm1146, %v961, -inf
    %1154 = vmax.xlane.f32.xlu0 %v1153
    %v1155 = vpop.xlane.xlu0 %1154
    %vm1156 = vcmask 80968
    %1157 = vst.msk [vmem:[#allocation3] sm:$0xff] %vm1156, %v1145
    %vm1158 = vcmask 74824
    %1159 = vst.msk [vmem:[#allocation3 + $0x8] sm:$0x3] %vm1158, %v1149
    %1160 = vst.msk [vmem:[#allocation3 + $0x10] sm:$0xff] %vm1156, %v1152
    %1161 = vst.msk [vmem:[#allocation3 + $0x18] sm:$0x3] %vm1158, %v1155
    %v1162 = vld [vmem:[#allocation3] sm:$0xff]
    %v1163 = vld [vmem:[#allocation3 + $0x8] sm:$0x3]
    %v1164 = vld [vmem:[#allocation3 + $0x10] sm:$0xff]
    %v1165 = vld [vmem:[#allocation3 + $0x18] sm:$0x3]
    %s1166 = sld [smem:[#allocation7 + $0x25]]
    %s1167 = sld [smem:[#allocation7 + $0x1c]]
    %v1168 = vstv %s1167
    %v1169 = vmul.f32 %v1168, %v1162
    %v1170 = vmul.f32 %v1168, %v1164
    %v1171 = vstv %s1166
    %v1172 = vadd.f32 %v1171, %v1169
    %v1173 = vadd.f32 %v1171, %v1170
    %s1174 = sld [smem:[#allocation7 + $0x1d]]
    %v1175 = vstv %s1174
    %v1176 = vmul.f32 %v1175, %v1162
    %v1177 = vmul.f32 %v1175, %v1164
    %1180 = vrot.lane.b32.xlu0 %v1176, 127
    %v1181 = vpop.permute.xlu0 %1180
    %1182 = vrot.lane.b32.xlu0 %v1177, 127
    %v1183 = vpop.permute.xlu0 %1182
    %v1186 = vadd.f32 %v1172, %v1181
    %v1187 = vadd.f32 %v1173, %v1183
    %s1188 = sld [smem:[#allocation7 + $0x1e]]
    %v1189 = vstv %s1188
    %v1190 = vmul.f32 %v1189, %v1162
    %v1191 = vmul.f32 %v1189, %v1164
    %1194 = vrot.lane.b32.xlu0 %v1190, 126
    %v1195 = vpop.permute.xlu0 %1194
    %1196 = vrot.lane.b32.xlu0 %v1191, 126
    %v1197 = vpop.permute.xlu0 %1196
    %v1200 = vadd.f32 %v1186, %v1195
    %v1201 = vadd.f32 %v1187, %v1197
    %s1202 = sld [smem:[#allocation7 + $0x1f]]
    %v1203 = vstv %s1202
    %v1204 = vmul.f32 %v1203, %v1162
    %v1205 = vmul.f32 %v1203, %v1163
    %v1206 = vmul.f32 %v1203, %v1164
    %v1207 = vmul.f32 %v1203, %v1165
    %vm1212 = vcmask 1046528
    %v1213 = vrot.slane %v1204, 1
    %v1214 = vrot.slane %v1205, 1
    %v1215 = vsel %vm1212, %v1213, %v1214
    %v1216 = vrot.slane %v1206, 1
    %v1217 = vrot.slane %v1207, 1
    %v1218 = vsel %vm1212, %v1216, %v1217
    %v1221 = vadd.f32 %v1200, %v1215
    %v1222 = vadd.f32 %v1201, %v1218
    %s1223 = sld [smem:[#allocation7 + $0x20]]
    %v1224 = vstv %s1223
    %v1225 = vmul.f32 %v1224, %v1162
    %v1226 = vmul.f32 %v1224, %v1163
    %v1227 = vmul.f32 %v1224, %v1164
    %v1228 = vmul.f32 %v1224, %v1165
    %v1233 = vrot.slane %v1225, 1
    %v1234 = vrot.slane %v1226, 1
    %v1235 = vsel %vm1212, %v1233, %v1234
    %v1236 = vrot.slane %v1227, 1
    %v1237 = vrot.slane %v1228, 1
    %v1238 = vsel %vm1212, %v1236, %v1237
    %1239 = vrot.lane.b32.xlu0 %v1235, 127
    %v1240 = vpop.permute.xlu0 %1239
    %1241 = vrot.lane.b32.xlu0 %v1238, 127
    %v1242 = vpop.permute.xlu0 %1241
    %v1245 = vadd.f32 %v1221, %v1240
    %v1246 = vadd.f32 %v1222, %v1242
    %s1247 = sld [smem:[#allocation7 + $0x21]]
    %v1248 = vstv %s1247
    %v1249 = vmul.f32 %v1248, %v1162
    %v1250 = vmul.f32 %v1248, %v1163
    %v1251 = vmul.f32 %v1248, %v1164
    %v1252 = vmul.f32 %v1248, %v1165
    %v1257 = vrot.slane %v1249, 1
    %v1258 = vrot.slane %v1250, 1
    %v1259 = vsel %vm1212, %v1257, %v1258
    %v1260 = vrot.slane %v1251, 1
    %v1261 = vrot.slane %v1252, 1
    %v1262 = vsel %vm1212, %v1260, %v1261
    %1263 = vrot.lane.b32.xlu0 %v1259, 126
    %v1264 = vpop.permute.xlu0 %1263
    %1265 = vrot.lane.b32.xlu0 %v1262, 126
    %v1266 = vpop.permute.xlu0 %1265
    %v1269 = vadd.f32 %v1245, %v1264
    %v1270 = vadd.f32 %v1246, %v1266
    %s1271 = sld [smem:[#allocation7 + $0x22]]
    %v1272 = vstv %s1271
    %v1273 = vmul.f32 %v1272, %v1162
    %v1274 = vmul.f32 %v1272, %v1163
    %v1275 = vmul.f32 %v1272, %v1164
    %v1276 = vmul.f32 %v1272, %v1165
    %vm1281 = vcmask 1045504
    %v1282 = vrot.slane %v1273, 2
    %v1283 = vrot.slane %v1274, 2
    %v1284 = vsel %vm1281, %v1282, %v1283
    %v1285 = vrot.slane %v1275, 2
    %v1286 = vrot.slane %v1276, 2
    %v1287 = vsel %vm1281, %v1285, %v1286
    %v1290 = vadd.f32 %v1269, %v1284
    %v1291 = vadd.f32 %v1270, %v1287
    %s1292 = sld [smem:[#allocation7 + $0x23]]
    %v1293 = vstv %s1292
    %v1294 = vmul.f32 %v1293, %v1162
    %v1295 = vmul.f32 %v1293, %v1163
    %v1296 = vmul.f32 %v1293, %v1164
    %v1297 = vmul.f32 %v1293, %v1165
    %v1302 = vrot.slane %v1294, 2
    %v1303 = vrot.slane %v1295, 2
    %v1304 = vsel %vm1281, %v1302, %v1303
    %v1305 = vrot.slane %v1296, 2
    %v1306 = vrot.slane %v1297, 2
    %v1307 = vsel %vm1281, %v1305, %v1306
    %1308 = vrot.lane.b32.xlu0 %v1304, 127
    %v1309 = vpop.permute.xlu0 %1308
    %1310 = vrot.lane.b32.xlu0 %v1307, 127
    %v1311 = vpop.permute.xlu0 %1310
    %v1314 = vadd.f32 %v1290, %v1309
    %v1315 = vadd.f32 %v1291, %v1311
    %s1316 = sld [smem:[#allocation7 + $0x24]]
    %v1317 = vstv %s1316
    %v1318 = vmul.f32 %v1317, %v1162
    %v1319 = vmul.f32 %v1317, %v1163
    %v1320 = vmul.f32 %v1317, %v1164
    %v1321 = vmul.f32 %v1317, %v1165
    %v1326 = vrot.slane %v1318, 2
    %v1327 = vrot.slane %v1319, 2
    %v1328 = vsel %vm1281, %v1326, %v1327
    %v1329 = vrot.slane %v1320, 2
    %v1330 = vrot.slane %v1321, 2
    %v1331 = vsel %vm1281, %v1329, %v1330
    %1332 = vrot.lane.b32.xlu0 %v1328, 126
    %v1333 = vpop.permute.xlu0 %1332
    %1334 = vrot.lane.b32.xlu0 %v1331, 126
    %v1335 = vpop.permute.xlu0 %1334
    %v1338 = vadd.f32 %v1314, %v1333
    %v1339 = vadd.f32 %v1315, %v1335
    %vm1340 = vcmask 58368
    %v1341 = vsel %vm1340, %v1338, -inf
    %v1342 = vrot.slane %v1341, 4
    %v1343 = vmax.f32 %v1341, %v1342
    %v1344 = vrot.slane %v1343, 2
    %v1345 = vmax.f32 %v1343, %v1344
    %v1346 = vrot.slane %v1345, 1
    %v1347 = vmax.f32 %v1345, %v1346
    %v1348 = vsel %vm1340, %v1339, -inf
    %v1349 = vrot.slane %v1348, 4
    %v1350 = vmax.f32 %v1348, %v1349
    %v1351 = vrot.slane %v1350, 2
    %v1352 = vmax.f32 %v1350, %v1351
    %v1353 = vrot.slane %v1352, 1
    %v1354 = vmax.f32 %v1352, %v1353
    %vm1355 = vcmask 57344
    %1356 = vst.msk [vmem:[#allocation4] sm:$0x1] %vm1355, %v1347
    %1357 = vst.msk [vmem:[#allocation4 + $0x4] sm:$0x1] %vm1355, %v1354
    %vm1358 = vcmask 60418
    %v1359 = vsel %vm1358, %v1338, -inf
    %v1360 = vrot.slane %v1359, 4
    %v1361 = vmax.f32 %v1359, %v1360
    %v1362 = vrot.slane %v1361, 2
    %v1363 = vmax.f32 %v1361, %v1362
    %v1364 = vrot.slane %v1363, 1
    %v1365 = vmax.f32 %v1363, %v1364
    %v1366 = vsel %vm1358, %v1339, -inf
    %v1367 = vrot.slane %v1366, 4
    %v1368 = vmax.f32 %v1366, %v1367
    %v1369 = vrot.slane %v1368, 2
    %v1370 = vmax.f32 %v1368, %v1369
    %v1371 = vrot.slane %v1370, 1
    %v1372 = vmax.f32 %v1370, %v1371
    %1373 = vst.msk [vmem:[#allocation4 + $0x1] sm:$0x1] %vm1355, %v1365
    %1374 = vst.msk [vmem:[#allocation4 + $0x5] sm:$0x1] %vm1355, %v1372
    %vm1375 = vcmask 62468
    %v1376 = vsel %vm1375, %v1338, -inf
    %v1377 = vrot.slane %v1376, 4
    %v1378 = vmax.f32 %v1376, %v1377
    %v1379 = vrot.slane %v1378, 2
    %v1380 = vmax.f32 %v1378, %v1379
    %v1381 = vrot.slane %v1380, 1
    %v1382 = vmax.f32 %v1380, %v1381
    %v1383 = vsel %vm1375, %v1339, -inf
    %v1384 = vrot.slane %v1383, 4
    %v1385 = vmax.f32 %v1383, %v1384
    %v1386 = vrot.slane %v1385, 2
    %v1387 = vmax.f32 %v1385, %v1386
    %v1388 = vrot.slane %v1387, 1
    %v1389 = vmax.f32 %v1387, %v1388
    %1390 = vst.msk [vmem:[#allocation4 + $0x2] sm:$0x1] %vm1355, %v1382
    %1391 = vst.msk [vmem:[#allocation4 + $0x6] sm:$0x1] %vm1355, %v1389
    %vm1392 = vcmask 64518
    %v1393 = vsel %vm1392, %v1338, -inf
    %v1394 = vrot.slane %v1393, 4
    %v1395 = vmax.f32 %v1393, %v1394
    %v1396 = vrot.slane %v1395, 2
    %v1397 = vmax.f32 %v1395, %v1396
    %v1398 = vrot.slane %v1397, 1
    %v1399 = vmax.f32 %v1397, %v1398
    %v1400 = vsel %vm1392, %v1339, -inf
    %v1401 = vrot.slane %v1400, 4
    %v1402 = vmax.f32 %v1400, %v1401
    %v1403 = vrot.slane %v1402, 2
    %v1404 = vmax.f32 %v1402, %v1403
    %v1405 = vrot.slane %v1404, 1
    %v1406 = vmax.f32 %v1404, %v1405
    %1407 = vst.msk [vmem:[#allocation4 + $0x3] sm:$0x1] %vm1355, %v1399
    %1408 = vst.msk [vmem:[#allocation4 + $0x7] sm:$0x1] %vm1355, %v1406
    %v1409 = vld [vmem:[#allocation4] sm:$0xf]
    %v1410 = vld [vmem:[#allocation4 + $0x4] sm:$0xf]
    %vm1411 = vcmask 11264
    %v1412 = vsel %vm1411, %v1409, -inf
    %1413 = vmax.xlane.f32.xlu0 %v1412
    %v1414 = vpop.xlane.xlu0 %1413
    %v1415 = vsel %vm1411, %v1410, -inf
    %1416 = vmax.xlane.f32.xlu0 %v1415
    %v1417 = vpop.xlane.xlu0 %1416
    %vm1418 = vcmask 3072
    %1419 = vst.msk [vmem:[#allocation5] sm:$0xf] %vm1418, %v1414
    %1420 = vst.msk [vmem:[#allocation5 + $0x4] sm:$0xf] %vm1418, %v1417
    %vm1421 = vcmask 27664
    %v1422 = vsel %vm1421, %v1409, -inf
    %1423 = vmax.xlane.f32.xlu0 %v1422
    %v1424 = vpop.xlane.xlu0 %1423
    %v1425 = vsel %vm1421, %v1410, -inf
    %1426 = vmax.xlane.f32.xlu0 %v1425
    %v1427 = vpop.xlane.xlu0 %1426
    %vm1428 = vcmask 11272
    %1429 = vst.msk [vmem:[#allocation5] sm:$0xf] %vm1428, %v1424
    %1430 = vst.msk [vmem:[#allocation5 + $0x4] sm:$0xf] %vm1428, %v1427
    %vm1431 = vcmask 44064
    %v1432 = vsel %vm1431, %v1409, -inf
    %1433 = vmax.xlane.f32.xlu0 %v1432
    %v1434 = vpop.xlane.xlu0 %1433
    %v1435 = vsel %vm1431, %v1410, -inf
    %1436 = vmax.xlane.f32.xlu0 %v1435
    %v1437 = vpop.xlane.xlu0 %1436
    %vm1438 = vcmask 19472
    %1439 = vst.msk [vmem:[#allocation5] sm:$0xf] %vm1438, %v1434
    %1440 = vst.msk [vmem:[#allocation5 + $0x4] sm:$0xf] %vm1438, %v1437
    %vm1441 = vcmask 60464
    %v1442 = vsel %vm1441, %v1409, -inf
    %1443 = vmax.xlane.f32.xlu0 %v1442
    %v1444 = vpop.xlane.xlu0 %1443
    %v1445 = vsel %vm1441, %v1410, -inf
    %1446 = vmax.xlane.f32.xlu0 %v1445
    %v1447 = vpop.xlane.xlu0 %1446
    %vm1448 = vcmask 27672
    %1449 = vst.msk [vmem:[#allocation5] sm:$0xf] %vm1448, %v1444
    %1450 = vst.msk [vmem:[#allocation5 + $0x4] sm:$0xf] %vm1448, %v1447
    %v1451 = vld [vmem:[#allocation5] sm:$0xf]
    %v1452 = vld [vmem:[#allocation5 + $0x4] sm:$0xf]
    %s1453 = sld [smem:[#allocation7 + $0x2f]]
    %s1454 = sld [smem:[#allocation7 + $0x26]]
    %v1455 = vstv %s1454
    %v1456 = vmul.f32 %v1455, %v1451
    %v1457 = vmul.f32 %v1455, %v1452
    %v1458 = vstv %s1453
    %v1459 = vadd.f32 %v1458, %v1456
    %v1460 = vadd.f32 %v1458, %v1457
    %s1461 = sld [smem:[#allocation7 + $0x27]]
    %v1462 = vstv %s1461
    %v1463 = vmul.f32 %v1462, %v1451
    %v1464 = vmul.f32 %v1462, %v1452
    %1467 = vrot.lane.b32.xlu0 %v1463, 127
    %v1468 = vpop.permute.xlu0 %1467
    %1469 = vrot.lane.b32.xlu0 %v1464, 127
    %v1470 = vpop.permute.xlu0 %1469
    %v1473 = vadd.f32 %v1459, %v1468
    %v1474 = vadd.f32 %v1460, %v1470
    %s1475 = sld [smem:[#allocation7 + $0x28]]
    %v1476 = vstv %s1475
    %v1477 = vmul.f32 %v1476, %v1451
    %v1478 = vmul.f32 %v1476, %v1452
    %1481 = vrot.lane.b32.xlu0 %v1477, 126
    %v1482 = vpop.permute.xlu0 %1481
    %1483 = vrot.lane.b32.xlu0 %v1478, 126
    %v1484 = vpop.permute.xlu0 %1483
    %v1487 = vadd.f32 %v1473, %v1482
    %v1488 = vadd.f32 %v1474, %v1484
    %s1489 = sld [smem:[#allocation7 + $0x29]]
    %v1490 = vstv %s1489
    %v1491 = vmul.f32 %v1490, %v1451
    %v1492 = vmul.f32 %v1490, %v1452
    %v1495 = vrot.slane %v1491, 1
    %v1496 = vrot.slane %v1492, 1
    %v1499 = vadd.f32 %v1487, %v1495
    %v1500 = vadd.f32 %v1488, %v1496
    %s1501 = sld [smem:[#allocation7 + $0x2a]]
    %v1502 = vstv %s1501
    %v1503 = vmul.f32 %v1502, %v1451
    %v1504 = vmul.f32 %v1502, %v1452
    %v1507 = vrot.slane %v1503, 1
    %v1508 = vrot.slane %v1504, 1
    %1509 = vrot.lane.b32.xlu0 %v1507, 127
    %v1510 = vpop.permute.xlu0 %1509
    %1511 = vrot.lane.b32.xlu0 %v1508, 127
    %v1512 = vpop.permute.xlu0 %1511
    %v1515 = vadd.f32 %v1499, %v1510
    %v1516 = vadd.f32 %v1500, %v1512
    %s1517 = sld [smem:[#allocation7 + $0x2b]]
    %v1518 = vstv %s1517
    %v1519 = vmul.f32 %v1518, %v1451
    %v1520 = vmul.f32 %v1518, %v1452
    %v1523 = vrot.slane %v1519, 1
    %v1524 = vrot.slane %v1520, 1
    %1525 = vrot.lane.b32.xlu0 %v1523, 126
    %v1526 = vpop.permute.xlu0 %1525
    %1527 = vrot.lane.b32.xlu0 %v1524, 126
    %v1528 = vpop.permute.xlu0 %1527
    %v1531 = vadd.f32 %v1515, %v1526
    %v1532 = vadd.f32 %v1516, %v1528
    %s1533 = sld [smem:[#allocation7 + $0x2c]]
    %v1534 = vstv %s1533
    %v1535 = vmul.f32 %v1534, %v1451
    %v1536 = vmul.f32 %v1534, %v1452
    %v1539 = vrot.slane %v1535, 2
    %v1540 = vrot.slane %v1536, 2
    %v1543 = vadd.f32 %v1531, %v1539
    %v1544 = vadd.f32 %v1532, %v1540
    %s1545 = sld [smem:[#allocation7 + $0x2d]]
    %v1546 = vstv %s1545
    %v1547 = vmul.f32 %v1546, %v1451
    %v1548 = vmul.f32 %v1546, %v1452
    %v1551 = vrot.slane %v1547, 2
    %v1552 = vrot.slane %v1548, 2
    %1553 = vrot.lane.b32.xlu0 %v1551, 127
    %v1554 = vpop.permute.xlu0 %1553
    %1555 = vrot.lane.b32.xlu0 %v1552, 127
    %v1556 = vpop.permute.xlu0 %1555
    %v1559 = vadd.f32 %v1543, %v1554
    %v1560 = vadd.f32 %v1544, %v1556
    %s1561 = sld [smem:[#allocation7 + $0x2e]]
    %v1562 = vstv %s1561
    %v1563 = vmul.f32 %v1562, %v1451
    %v1564 = vmul.f32 %v1562, %v1452
    %v1567 = vrot.slane %v1563, 2
    %v1568 = vrot.slane %v1564, 2
    %1569 = vrot.lane.b32.xlu0 %v1567, 126
    %v1570 = vpop.permute.xlu0 %1569
    %1571 = vrot.lane.b32.xlu0 %v1568, 126
    %v1572 = vpop.permute.xlu0 %1571
    %v1575 = vadd.f32 %v1559, %v1570
    %v1576 = vadd.f32 %v1560, %v1572
    %v1579 = vrot.slane %v1576, 7
    %vm1580 = vcmask 1041409
    %v1581 = vsel %vm1580, %v1579, %v1575
    %vm1583 = vcmask 9216
    %1584 = vst.msk [vmem:[#allocation6] sm:$0x3] %vm1583, %v1581
    %vm1585 = vcmask 1042434
    %v1586 = vsel %vm1585, %v1579, %v1575
    %1587 = vrot.lane.b32.xlu0 %v1586, 2
    %v1588 = vpop.permute.xlu0 %1587
    %vm1590 = vcmask 26641
    %1591 = vst.msk [vmem:[#allocation6 - $0x1] sm:$0x6] %vm1590, %v1588
    %v1592 = vld [vmem:[#allocation6] sm:$0x3]
    %v1593 = vld [vmem:[%s2] sm:$0x1f]
    %v1594 = vld [vmem:[%s3] sm:$0xff]
    %v1595 = vld [vmem:[%s3 + $0x8] sm:$0x1]
    %v1596 = vperm.slane %v1592, 0
    %v1597 = vlaneseq
    %v1598 = vshrl.u32 %v1597, 7
    %1600 = vset.pattern.permute.xlu0 %v1598
    %1601 = vperm.xlu0 %1600, %v1596
    %v1602 = vpop.permute.xlu0 %1601
    %v1603 = vperm.slane %v1592, 1
    %v1604 = vlaneseq
    %v1605 = vshrl.u32 %v1604, 7
    %1607 = vset.pattern.permute.xlu0 %v1605
    %1608 = vperm.xlu0 %1607, %v1603
    %v1609 = vpop.permute.xlu0 %1608
    %v1610 = vmul.f32 %v1602, %v1593
    %v1611 = vmul.f32 %v1609, %v1593
    %vm1612 = vcmask 60416
    %v1613 = vsel %vm1612, %v1610, 0.0
    %v1614 = vrot.slane %v1613, 4
    %v1615 = vadd.f32 %v1613, %v1614
    %v1616 = vrot.slane %v1615, 2
    %v1617 = vadd.f32 %v1615, %v1616
    %v1618 = vrot.slane %v1617, 1
    %v1619 = vadd.f32 %v1617, %v1618
    %v1620 = vsel %vm1612, %v1611, 0.0
    %v1621 = vrot.slane %v1620, 4
    %v1622 = vadd.f32 %v1620, %v1621
    %v1623 = vrot.slane %v1622, 2
    %v1624 = vadd.f32 %v1622, %v1623
    %v1625 = vrot.slane %v1624, 1
    %v1626 = vadd.f32 %v1624, %v1625
    %v1627 = vperm.slane %v1593, 4
    %v1628 = vadd.f32 %v1619, %v1627
    %v1629 = vadd.f32 %v1626, %v1627
    %v1630 = vmax.f32 %v1628, 0.0
    %v1631 = vmax.f32 %v1629, 0.0
    %v1632 = vperm.slane %v1630, 0
    %v1633 = vlaneseq
    %v1634 = vshrl.u32 %v1633, 7
    %1636 = vset.pattern.permute.xlu0 %v1634
    %1637 = vperm.xlu0 %1636, %v1632
    %v1638 = vpop.permute.xlu0 %1637
    %v1639 = vperm.slane %v1631, 0
    %v1640 = vlaneseq
    %v1641 = vshrl.u32 %v1640, 7
    %1643 = vset.pattern.permute.xlu0 %v1641
    %1644 = vperm.xlu0 %1643, %v1639
    %v1645 = vpop.permute.xlu0 %1644
    %v1646 = vmul.f32 %v1638, %v1594
    %v1647 = vmul.f32 %v1645, %v1594
    %v1648 = vsel %vm962, %v1646, 0.0
    %v1649 = vrot.slane %v1648, 4
    %v1650 = vadd.f32 %v1648, %v1649
    %v1651 = vrot.slane %v1650, 2
    %v1652 = vadd.f32 %v1650, %v1651
    %v1653 = vrot.slane %v1652, 1
    %v1654 = vadd.f32 %v1652, %v1653
    %v1655 = vsel %vm962, %v1647, 0.0
    %v1656 = vrot.slane %v1655, 4
    %v1657 = vadd.f32 %v1655, %v1656
    %v1658 = vrot.slane %v1657, 2
    %v1659 = vadd.f32 %v1657, %v1658
    %v1660 = vrot.slane %v1659, 1
    %v1661 = vadd.f32 %v1659, %v1660
    %v1662 = vperm.slane %v1595, 0
    %v1663 = vadd.f32 %v1654, %v1662
    %v1664 = vadd.f32 %v1661, %v1662
    %v1667 = vrot.slane %v1664, 7
    %v1668 = vsel %vm1580, %v1667, %v1663
    %vm1670 = vcmask 41984
    %1671 = vst.msk [vmem:[#allocation10] sm:$0x3] %vm1670, %v1668
    %1672 = vrot.lane.b32.xlu0 %v1668, 122
    %v1673 = vpop.permute.xlu0 %1672
    %1675 = vst.msk [vmem:[%s5] sm:$0x3] %vm978, %v1673
    // Predicated region
    $region22: #{forward.1} parent=1 // pred_check
      _
    $region23: #{forward.1} parent=1 // pred_check_branch
      %1677 = sbr.rel (0) target = $region25
    $region24: #{forward.1} parent=1 // pred_region
      %1679 = vsyncadd [#allocation8], 0
      %s1681 = sshll.u32 [#allocation10], 4
      %s1682 = int_to_ptr.vmem [resolvable:$true] %s1681
      %s1683 = sshll.u32 %s4, 4
      %s1684 = int_to_ptr.hbm [resolvable:$true] %s1683
      %1686 = dma.vmem_to_hbm [thread:$0]  %s1682, 32, %s1684, [#allocation8]
    $region25: #{forward.1} parent=1 // pred_fallthru
      _
    // Predicated region
    $region26: #{forward.1} parent=1 // pred_check
      _
    $region27: #{forward.1} parent=1 // pred_check_branch
      %1688 = sbr.rel (0) target = $region29
    $region28: #{forward.1} parent=1 // pred_region
      _
    $region29: #{forward.1} parent=1 // pred_fallthru
      _
    // Predicated region
    $region30: #{forward.1} parent=1 // pred_check
      _
    $region31: #{forward.1} parent=1 // pred_check_branch
      %1690 = sbr.rel (0) target = $region33
    $region32: #{forward.1} parent=1 // pred_region
      %1692 = dma.done [#allocation8], 32
    $region33: #{forward.1} parent=1 // pred_fallthru
      _
    // Predicated region
    $region34: #{forward.1} parent=1 // pred_check
      _
    $region35: #{forward.1} parent=1 // pred_check_branch
      %1694 = sbr.rel (0) target = $region37
    $region36: #{forward.1} parent=1 // pred_region
      _
    $region37: #{forward.1} parent=1 // pred_fallthru
      _
    %1695 = vsyncpa [#allocation8], 1
    %1696 = vsyncpa [#allocation9], 1

</llo_original>
